<compile_context>
chip_gen: v6e
topology: v6e:2x2x1
jax: 0.10.0
libtpu: 0.0.40
codegen_flags: <defaults>
</compile_context>

<pallas_src>
import numpy as np
import jax
import jax.numpy as jnp
from jax.experimental import pallas as pl
from jax.experimental.pallas import tpu as pltpu

# TODO(synk): the frozen CLIP ViT-B/16 backbone (clip_model.encode_image /
# encode_text), the kornia ColorJitter/resize preprocessing, the multi
# image_key loop and the discrete-action CrossEntropyLoss branch have no clean
# Pallas equivalent here; CLIP features are synthetic inputs and the
# continuous-action (MSELoss) path is implemented.


def _adapter_encode(x, w1, b1, w2, b2, res):
    """AdapterMLP + sigmoid residual blend + F.normalize (on in-kernel values)."""
    h = jnp.maximum(jnp.dot(x, w1, preferred_element_type=jnp.float32) + b1, 0.0)
    a = jnp.dot(h, w2, preferred_element_type=jnp.float32) + b2
    y = res * x + (1.0 - res) * a
    norm = jnp.sqrt(jnp.sum(y * y, axis=-1, keepdims=True))
    return y / jnp.maximum(norm, 1e-12)       # F.normalize(dim=-1) semantics


# ---------------------------------------------------------------------------
# Single fused kernel:
#   adapted_img_{0,1,2} = encode_image(img_{0,1,2})        (stacked, 1 MXU pass)
#   adapted_txt         = encode_text(txt)
#   action_out          = inverse_layer([ai1, txt, ai2, txt])   (partial GEMMs)
#   score_k = exp(logit_scale) * <ai_k, adapted_txt>
#   vip  = (1-gamma) * -mean(score0) + log(eps + mean(exp(-((r-1)+gamma*s2-s1))))
#   id   = mean((action_out - action)^2)
#   loss = use_vip * vip + use_id * lambda_id * id
# ---------------------------------------------------------------------------
def clip_adapter_fused_kernel(
        scalars_ref,                             # SMEM (7,)
        img0_ref, img1_ref, img2_ref, txt_ref,   # (B, Din) CLIP features
        iw1_ref, ib1_ref, iw2_ref, ib2_ref,      # image adapter weights
        tw1_ref, tb1_ref, tw2_ref, tb2_ref,      # text adapter weights
        vw1_ref, vb1_ref, vw2_ref, vb2_ref,      # inverse layer weights
        act_ref, r_ref,                          # action target, batch['r']
        out_ref):                                # (1,1) total loss
    img_res = jax.nn.sigmoid(scalars_ref[0])
    txt_res = jax.nn.sigmoid(scalars_ref[1])
    ls      = jnp.exp(scalars_ref[2])            # logit_scale.exp()
    gamma   = scalars_ref[3]
    lam     = scalars_ref[4]                     # lambda_id
    use_vip = scalars_ref[5]
    use_id  = scalars_ref[6]

    B = img0_ref.shape[0]

    # --- image adapter: stack the 3 used streams into one (3B, D) LHS -------
    x_img = jnp.concatenate([img0_ref[...], img1_ref[...], img2_ref[...]], axis=0)
    y_img = _adapter_encode(x_img, iw1_ref[...], ib1_ref[...],
                            iw2_ref[...], ib2_ref[...], img_res)
    ai0 = y_img[0 * B:1 * B]
    ai1 = y_img[1 * B:2 * B]
    ai2 = y_img[2 * B:3 * B]

    # --- text adapter --------------------------------------------------------
    yt = _adapter_encode(txt_ref[...], tw1_ref[...], tb1_ref[...],
                         tw2_ref[...], tb2_ref[...], txt_res)
    D = yt.shape[1]

    # --- inverse layer on concat([ai1, txt, ai2, txt]) without the concat ---
    vw1 = vw1_ref[...]                            # (4D, H)
    h2 = (jnp.dot(ai1, vw1[0 * D:1 * D], preferred_element_type=jnp.float32)
          + jnp.dot(yt,  vw1[1 * D:2 * D], preferred_element_type=jnp.float32)
          + jnp.dot(ai2, vw1[2 * D:3 * D], preferred_element_type=jnp.float32)
          + jnp.dot(yt,  vw1[3 * D:4 * D], preferred_element_type=jnp.float32)
          + vb1_ref[...])
    h2 = jnp.maximum(h2, 0.0)
    action_out = (jnp.dot(h2, vw2_ref[...], preferred_element_type=jnp.float32)
                  + vb2_ref[...])

    # --- logit-scaled diag scores (row reductions against the text tile) ----
    s0 = ls * jnp.sum(ai0 * yt, axis=-1, keepdims=True)    # (B,1)
    s1 = ls * jnp.sum(ai1 * yt, axis=-1, keepdims=True)
    s2 = ls * jnp.sum(ai2 * yt, axis=-1, keepdims=True)

    # --- VIP loss, max-shifted (identical to log(eps + mean(exp(z)))) -------
    r = r_ref[...] - 1.0                                    # batch['r'] - 1
    z = s1 - gamma * s2 - r                                 # == -((r-1)+g*s2-s1)
    m = jnp.maximum(jnp.max(z, axis=0, keepdims=True), 0.0)          # (1,1)
    mean_exp = jnp.sum(jnp.exp(z - m), axis=0, keepdims=True) / B    # (1,1)
    mean_s0 = jnp.sum(s0, axis=0, keepdims=True) / B
    vip = (1.0 - gamma) * (-mean_s0) + (m + jnp.log(1e-8 * jnp.exp(-m) + mean_exp))

    # --- MSE id loss ----------------------------------------------------------
    diff = action_out - act_ref[...]
    n_elems = diff.shape[0] * diff.shape[1]
    id_loss = jnp.sum(diff * diff, axis=(0, 1), keepdims=True) / n_elems

    out_ref[...] = use_vip * vip + use_id * lam * id_loss


def clip_adapter_forward(params, img_feats, txt_feat, r, action,
                         use_vip_loss=True, use_id_loss=True):
    """Mirrors CLIPAdapter.forward for a single image_key, CLIP features given.

    Only img_feats[0:3] feed the loss (image3's encoding never reaches the
    loss in the reference module), so only those are sent to the kernel.
    """
    scalars = jnp.array([params["image_residual_weight"],
                         params["text_residual_weight"],
                         params["logit_scale"],
                         params["gamma"],
                         params["lambda_id"],
                         1.0 if use_vip_loss else 0.0,
                         1.0 if use_id_loss else 0.0], jnp.float32)

    loss = pl.pallas_call(
        clip_adapter_fused_kernel,
        out_shape=jax.ShapeDtypeStruct((1, 1), jnp.float32),
        in_specs=[pl.BlockSpec(memory_space=pltpu.MemorySpace.SMEM)]       # scalars
                 + [pl.BlockSpec(memory_space=pltpu.MemorySpace.VMEM)] * 18,
        out_specs=pl.BlockSpec(memory_space=pltpu.MemorySpace.VMEM),
    )(scalars,
      img_feats[0], img_feats[1], img_feats[2], txt_feat,
      params["img_w1"], params["img_b1"], params["img_w2"], params["img_b2"],
      params["txt_w1"], params["txt_b1"], params["txt_w2"], params["txt_b2"],
      params["inv_w1"], params["inv_b1"], params["inv_w2"], params["inv_b2"],
      action, r)
    return loss[0, 0]     # total_loss.mean() on a scalar


# ---------------------------------------------------------------------------
# Pure-JAX reference (same math as the PyTorch module) for correctness check.
# ---------------------------------------------------------------------------
def reference_forward(params, img_feats, txt_feat, r, action,
                      use_vip_loss=True, use_id_loss=True):
    def adapter(x, w1, b1, w2, b2, res_raw):
        h = jnp.maximum(x @ w1 + b1, 0.0)
        a = h @ w2 + b2
        res = jax.nn.sigmoid(res_raw)
        y = res * x + (1.0 - res) * a
        return y / jnp.maximum(jnp.linalg.norm(y, axis=-1, keepdims=True), 1e-12)

    ai = [adapter(f, params["img_w1"], params["img_b1"],
                  params["img_w2"], params["img_b2"],
                  params["image_residual_weight"]) for f in img_feats[:3]]
    at = adapter(txt_feat, params["txt_w1"], params["txt_b1"],
                 params["txt_w2"], params["txt_b2"],
                 params["text_residual_weight"])

    ls = jnp.exp(params["logit_scale"])
    s0 = ls * jnp.sum(ai[0] * at, axis=-1, keepdims=True)
    s1 = ls * jnp.sum(ai[1] * at, axis=-1, keepdims=True)
    s2 = ls * jnp.sum(ai[2] * at, axis=-1, keepdims=True)

    gamma = params["gamma"]
    rr = r - 1.0
    vip = (1.0 - gamma) * (-jnp.mean(s0)) + jnp.log(
        1e-8 + jnp.mean(jnp.exp(-(rr + gamma * s2 - s1))))

    concat = jnp.concatenate([ai[1], at, ai[2], at], axis=-1)
    h = jnp.maximum(concat @ params["inv_w1"] + params["inv_b1"], 0.0)
    action_out = h @ params["inv_w2"] + params["inv_b2"]
    id_loss = jnp.mean((action_out - action) ** 2)

    total = 0.0
    if use_vip_loss:
        total = total + vip
    if use_id_loss:
        total = total + params["lambda_id"] * id_loss
    return total


if __name__ == "__main__":
    # Small, module-consistent shapes:
    #   batch=8, input_dim=32, hidden_dim=64, output_dim=32, action_dim=15
    B, D_IN, D_HID, D_OUT, A_DIM = 8, 32, 64, 32, 15

    key = jax.random.PRNGKey(0)
    keys = jax.random.split(key, 16)

    def linear_params(k, din, dout):
        kw, kb = jax.random.split(k)
        w = jax.random.normal(kw, (din, dout), jnp.float32) / np.sqrt(din)
        b = jax.random.normal(kb, (1, dout), jnp.float32) * 0.01
        return w, b

    img_w1, img_b1 = linear_params(keys[0], D_IN, D_HID)
    img_w2, img_b2 = linear_params(keys[1], D_HID, D_OUT)
    txt_w1, txt_b1 = linear_params(keys[2], D_IN, D_HID)
    txt_w2, txt_b2 = linear_params(keys[3], D_HID, D_OUT)
    inv_w1, inv_b1 = linear_params(keys[4], 4 * D_OUT, D_HID)
    inv_w2, inv_b2 = linear_params(keys[5], D_HID, A_DIM)

    params = dict(
        img_w1=img_w1, img_b1=img_b1, img_w2=img_w2, img_b2=img_b2,
        txt_w1=txt_w1, txt_b1=txt_b1, txt_w2=txt_w2, txt_b2=txt_b2,
        inv_w1=inv_w1, inv_b1=inv_b1, inv_w2=inv_w2, inv_b2=inv_b2,
        image_residual_weight=jnp.float32(4.0),         # nn.Parameter(4.0)
        text_residual_weight=jnp.float32(4.0),          # nn.Parameter(4.0)
        logit_scale=jnp.float32(np.log(1.0 / 0.07)),    # CLIP default init
        lambda_id=jnp.float32(np.log(1.0 / 0.07)),      # matches the module's init
        gamma=jnp.float32(0.98),
    )

    # Synthetic CLIP features for image0..image3 and the instruction text.
    img_feats = [jax.random.normal(keys[6 + i], (B, D_IN), jnp.float32)
                 for i in range(4)]
    txt_feat = jax.random.normal(keys[10], (B, D_IN), jnp.float32)
    r = jax.random.normal(keys[11], (B, 1), jnp.float32) * 0.1     # batch['r']
    action = jax.random.normal(keys[12], (B, A_DIM), jnp.float32)  # batch['action']

    loss = clip_adapter_forward(params, img_feats, txt_feat, r, action,
                                use_vip_loss=True, use_id_loss=True)
    loss = jax.block_until_ready(loss)

    ref = reference_forward(params, img_feats, txt_feat, r, action,
                            use_vip_loss=True, use_id_loss=True)
    ref = jax.block_until_ready(ref)

    assert np.isfinite(np.asarray(loss))
    np.testing.assert_allclose(np.asarray(loss), np.asarray(ref),
                               rtol=2e-3, atol=2e-3)
    print("KERNEL_OK")
</pallas_src>

<mosaic_0001>
module attributes {stable_mosaic.version = 11 : i64} {
  func.func @clip_adapter_fused_kernel(%arg0: memref<7xf32, #tpu.memory_space<smem>>, %arg1: memref<8x32xf32, #tpu.memory_space<vmem>>, %arg2: memref<8x32xf32, #tpu.memory_space<vmem>>, %arg3: memref<8x32xf32, #tpu.memory_space<vmem>>, %arg4: memref<8x32xf32, #tpu.memory_space<vmem>>, %arg5: memref<32x64xf32, #tpu.memory_space<vmem>>, %arg6: memref<1x64xf32, #tpu.memory_space<vmem>>, %arg7: memref<64x32xf32, #tpu.memory_space<vmem>>, %arg8: memref<1x32xf32, #tpu.memory_space<vmem>>, %arg9: memref<32x64xf32, #tpu.memory_space<vmem>>, %arg10: memref<1x64xf32, #tpu.memory_space<vmem>>, %arg11: memref<64x32xf32, #tpu.memory_space<vmem>>, %arg12: memref<1x32xf32, #tpu.memory_space<vmem>>, %arg13: memref<128x64xf32, #tpu.memory_space<vmem>>, %arg14: memref<1x64xf32, #tpu.memory_space<vmem>>, %arg15: memref<64x15xf32, #tpu.memory_space<vmem>>, %arg16: memref<1x15xf32, #tpu.memory_space<vmem>>, %arg17: memref<8x15xf32, #tpu.memory_space<vmem>>, %arg18: memref<8x1xf32, #tpu.memory_space<vmem>>, %arg19: memref<1x1xf32, #tpu.memory_space<vmem>>) attributes {dimension_semantics = [], scalar_prefetch = 0 : i64, scratch_operands = 0 : i64, tpu.core_type = #tpu.core_type<tc>} {
    %c0 = arith.constant 0 : index
    %0 = memref.load %arg0[%c0] : memref<7xf32, #tpu.memory_space<smem>>
    %1 = arith.negf %0 : f32
    %2 = math.exp %1 : f32
    %cst = arith.constant 1.000000e+00 : f32
    %3 = arith.addf %cst, %2 : f32
    %4 = arith.divf %cst, %3 : f32
    %c1 = arith.constant 1 : index
    %5 = memref.load %arg0[%c1] : memref<7xf32, #tpu.memory_space<smem>>
    %6 = arith.negf %5 : f32
    %7 = math.exp %6 : f32
    %cst_0 = arith.constant 1.000000e+00 : f32
    %8 = arith.addf %cst_0, %7 : f32
    %9 = arith.divf %cst_0, %8 : f32
    %c2 = arith.constant 2 : index
    %10 = memref.load %arg0[%c2] : memref<7xf32, #tpu.memory_space<smem>>
    %11 = math.exp %10 : f32
    %c3 = arith.constant 3 : index
    %12 = memref.load %arg0[%c3] : memref<7xf32, #tpu.memory_space<smem>>
    %c4 = arith.constant 4 : index
    %13 = memref.load %arg0[%c4] : memref<7xf32, #tpu.memory_space<smem>>
    %c5 = arith.constant 5 : index
    %14 = memref.load %arg0[%c5] : memref<7xf32, #tpu.memory_space<smem>>
    %c6 = arith.constant 6 : index
    %15 = memref.load %arg0[%c6] : memref<7xf32, #tpu.memory_space<smem>>
    %c0_1 = arith.constant 0 : index
    %c0_2 = arith.constant 0 : index
    %16 = vector.load %arg1[%c0_1, %c0_2] : memref<8x32xf32, #tpu.memory_space<vmem>>, vector<8x32xf32>
    %c0_3 = arith.constant 0 : index
    %c0_4 = arith.constant 0 : index
    %17 = vector.load %arg2[%c0_3, %c0_4] : memref<8x32xf32, #tpu.memory_space<vmem>>, vector<8x32xf32>
    %c0_5 = arith.constant 0 : index
    %c0_6 = arith.constant 0 : index
    %18 = vector.load %arg3[%c0_5, %c0_6] : memref<8x32xf32, #tpu.memory_space<vmem>>, vector<8x32xf32>
    %19 = tpu.concatenate %16, %17, %18 in 0 : vector<8x32xf32>, vector<8x32xf32>, vector<8x32xf32> -> vector<24x32xf32>
    %c0_7 = arith.constant 0 : index
    %c0_8 = arith.constant 0 : index
    %20 = vector.load %arg5[%c0_7, %c0_8] : memref<32x64xf32, #tpu.memory_space<vmem>>, vector<32x64xf32>
    %c0_9 = arith.constant 0 : index
    %c0_10 = arith.constant 0 : index
    %21 = vector.load %arg6[%c0_9, %c0_10] : memref<1x64xf32, #tpu.memory_space<vmem>>, vector<1x64xf32>
    %c0_11 = arith.constant 0 : index
    %c0_12 = arith.constant 0 : index
    %22 = vector.load %arg7[%c0_11, %c0_12] : memref<64x32xf32, #tpu.memory_space<vmem>>, vector<64x32xf32>
    %c0_13 = arith.constant 0 : index
    %c0_14 = arith.constant 0 : index
    %23 = vector.load %arg8[%c0_13, %c0_14] : memref<1x32xf32, #tpu.memory_space<vmem>>, vector<1x32xf32>
    %cst_15 = arith.constant dense<0.000000e+00> : vector<24x64xf32>
    %24 = tpu.matmul %19, %20, %cst_15 {dimension_numbers = #tpu.dot_dimension_numbers<[1], [0], [0], [1], [0, 0, 1, 1], [], []>} : vector<24x32xf32>, vector<32x64xf32>, vector<24x64xf32> -> vector<24x64xf32>
    %25 = vector.broadcast %21 : vector<1x64xf32> to vector<24x64xf32>
    %26 = arith.addf %24, %25 : vector<24x64xf32>
    %cst_16 = arith.constant 0.000000e+00 : f32
    %27 = vector.broadcast %cst_16 : f32 to vector<24x64xf32>
    %28 = arith.maximumf %26, %27 : vector<24x64xf32>
    %cst_17 = arith.constant dense<0.000000e+00> : vector<24x32xf32>
    %29 = tpu.matmul %28, %22, %cst_17 {dimension_numbers = #tpu.dot_dimension_numbers<[1], [0], [0], [1], [0, 0, 1, 1], [], []>} : vector<24x64xf32>, vector<64x32xf32>, vector<24x32xf32> -> vector<24x32xf32>
    %30 = vector.broadcast %23 : vector<1x32xf32> to vector<24x32xf32>
    %31 = arith.addf %29, %30 : vector<24x32xf32>
    %32 = vector.broadcast %4 : f32 to vector<24x32xf32>
    %33 = arith.mulf %32, %19 : vector<24x32xf32>
    %cst_18 = arith.constant 1.000000e+00 : f32
    %34 = arith.subf %cst_18, %4 : f32
    %35 = vector.broadcast %34 : f32 to vector<24x32xf32>
    %36 = arith.mulf %35, %31 : vector<24x32xf32>
    %37 = arith.addf %33, %36 : vector<24x32xf32>
    %38 = arith.mulf %37, %37 : vector<24x32xf32>
    %cst_19 = arith.constant dense<0.000000e+00> : vector<24xf32>
    %39 = vector.multi_reduction <add>, %38, %cst_19 [1] : vector<24x32xf32> to vector<24xf32>
    %40 = vector.shape_cast %39 : vector<24xf32> to vector<24x1xf32>
    %41 = math.sqrt %40 : vector<24x1xf32>
    %cst_20 = arith.constant 9.99999996E-13 : f32
    %42 = vector.broadcast %cst_20 : f32 to vector<24x1xf32>
    %43 = arith.maximumf %41, %42 : vector<24x1xf32>
    %44 = vector.broadcast %43 : vector<24x1xf32> to vector<24x32xf32>
    %45 = arith.divf %37, %44 : vector<24x32xf32>
    %46 = vector.extract_strided_slice %45 {offsets = [0, 0], sizes = [8, 32], strides = [1, 1]} : vector<24x32xf32> to vector<8x32xf32>
    %47 = vector.extract_strided_slice %45 {offsets = [8, 0], sizes = [8, 32], strides = [1, 1]} : vector<24x32xf32> to vector<8x32xf32>
    %48 = vector.extract_strided_slice %45 {offsets = [16, 0], sizes = [8, 32], strides = [1, 1]} : vector<24x32xf32> to vector<8x32xf32>
    %c0_21 = arith.constant 0 : index
    %c0_22 = arith.constant 0 : index
    %49 = vector.load %arg4[%c0_21, %c0_22] : memref<8x32xf32, #tpu.memory_space<vmem>>, vector<8x32xf32>
    %c0_23 = arith.constant 0 : index
    %c0_24 = arith.constant 0 : index
    %50 = vector.load %arg9[%c0_23, %c0_24] : memref<32x64xf32, #tpu.memory_space<vmem>>, vector<32x64xf32>
    %c0_25 = arith.constant 0 : index
    %c0_26 = arith.constant 0 : index
    %51 = vector.load %arg10[%c0_25, %c0_26] : memref<1x64xf32, #tpu.memory_space<vmem>>, vector<1x64xf32>
    %c0_27 = arith.constant 0 : index
    %c0_28 = arith.constant 0 : index
    %52 = vector.load %arg11[%c0_27, %c0_28] : memref<64x32xf32, #tpu.memory_space<vmem>>, vector<64x32xf32>
    %c0_29 = arith.constant 0 : index
    %c0_30 = arith.constant 0 : index
    %53 = vector.load %arg12[%c0_29, %c0_30] : memref<1x32xf32, #tpu.memory_space<vmem>>, vector<1x32xf32>
    %cst_31 = arith.constant dense<0.000000e+00> : vector<8x64xf32>
    %54 = tpu.matmul %49, %50, %cst_31 {dimension_numbers = #tpu.dot_dimension_numbers<[1], [0], [0], [1], [0, 0, 1, 1], [], []>} : vector<8x32xf32>, vector<32x64xf32>, vector<8x64xf32> -> vector<8x64xf32>
    %55 = vector.broadcast %51 : vector<1x64xf32> to vector<8x64xf32>
    %56 = arith.addf %54, %55 : vector<8x64xf32>
    %cst_32 = arith.constant 0.000000e+00 : f32
    %57 = vector.broadcast %cst_32 : f32 to vector<8x64xf32>
    %58 = arith.maximumf %56, %57 : vector<8x64xf32>
    %cst_33 = arith.constant dense<0.000000e+00> : vector<8x32xf32>
    %59 = tpu.matmul %58, %52, %cst_33 {dimension_numbers = #tpu.dot_dimension_numbers<[1], [0], [0], [1], [0, 0, 1, 1], [], []>} : vector<8x64xf32>, vector<64x32xf32>, vector<8x32xf32> -> vector<8x32xf32>
    %60 = vector.broadcast %53 : vector<1x32xf32> to vector<8x32xf32>
    %61 = arith.addf %59, %60 : vector<8x32xf32>
    %62 = vector.broadcast %9 : f32 to vector<8x32xf32>
    %63 = arith.mulf %62, %49 : vector<8x32xf32>
    %cst_34 = arith.constant 1.000000e+00 : f32
    %64 = arith.subf %cst_34, %9 : f32
    %65 = vector.broadcast %64 : f32 to vector<8x32xf32>
    %66 = arith.mulf %65, %61 : vector<8x32xf32>
    %67 = arith.addf %63, %66 : vector<8x32xf32>
    %68 = arith.mulf %67, %67 : vector<8x32xf32>
    %cst_35 = arith.constant dense<0.000000e+00> : vector<8xf32>
    %69 = vector.multi_reduction <add>, %68, %cst_35 [1] : vector<8x32xf32> to vector<8xf32>
    %70 = vector.shape_cast %69 : vector<8xf32> to vector<8x1xf32>
    %71 = math.sqrt %70 : vector<8x1xf32>
    %cst_36 = arith.constant 9.99999996E-13 : f32
    %72 = vector.broadcast %cst_36 : f32 to vector<8x1xf32>
    %73 = arith.maximumf %71, %72 : vector<8x1xf32>
    %74 = vector.broadcast %73 : vector<8x1xf32> to vector<8x32xf32>
    %75 = arith.divf %67, %74 : vector<8x32xf32>
    %c0_37 = arith.constant 0 : index
    %c0_38 = arith.constant 0 : index
    %76 = vector.load %arg13[%c0_37, %c0_38] : memref<128x64xf32, #tpu.memory_space<vmem>>, vector<128x64xf32>
    %77 = vector.extract_strided_slice %76 {offsets = [0, 0], sizes = [32, 64], strides = [1, 1]} : vector<128x64xf32> to vector<32x64xf32>
    %cst_39 = arith.constant dense<0.000000e+00> : vector<8x64xf32>
    %78 = tpu.matmul %47, %77, %cst_39 {dimension_numbers = #tpu.dot_dimension_numbers<[1], [0], [0], [1], [0, 0, 1, 1], [], []>} : vector<8x32xf32>, vector<32x64xf32>, vector<8x64xf32> -> vector<8x64xf32>
    %79 = vector.extract_strided_slice %76 {offsets = [32, 0], sizes = [32, 64], strides = [1, 1]} : vector<128x64xf32> to vector<32x64xf32>
    %cst_40 = arith.constant dense<0.000000e+00> : vector<8x64xf32>
    %80 = tpu.matmul %75, %79, %cst_40 {dimension_numbers = #tpu.dot_dimension_numbers<[1], [0], [0], [1], [0, 0, 1, 1], [], []>} : vector<8x32xf32>, vector<32x64xf32>, vector<8x64xf32> -> vector<8x64xf32>
    %81 = arith.addf %78, %80 : vector<8x64xf32>
    %82 = vector.extract_strided_slice %76 {offsets = [64, 0], sizes = [32, 64], strides = [1, 1]} : vector<128x64xf32> to vector<32x64xf32>
    %cst_41 = arith.constant dense<0.000000e+00> : vector<8x64xf32>
    %83 = tpu.matmul %48, %82, %cst_41 {dimension_numbers = #tpu.dot_dimension_numbers<[1], [0], [0], [1], [0, 0, 1, 1], [], []>} : vector<8x32xf32>, vector<32x64xf32>, vector<8x64xf32> -> vector<8x64xf32>
    %84 = arith.addf %81, %83 : vector<8x64xf32>
    %85 = vector.extract_strided_slice %76 {offsets = [96, 0], sizes = [32, 64], strides = [1, 1]} : vector<128x64xf32> to vector<32x64xf32>
    %cst_42 = arith.constant dense<0.000000e+00> : vector<8x64xf32>
    %86 = tpu.matmul %75, %85, %cst_42 {dimension_numbers = #tpu.dot_dimension_numbers<[1], [0], [0], [1], [0, 0, 1, 1], [], []>} : vector<8x32xf32>, vector<32x64xf32>, vector<8x64xf32> -> vector<8x64xf32>
    %87 = arith.addf %84, %86 : vector<8x64xf32>
    %c0_43 = arith.constant 0 : index
    %c0_44 = arith.constant 0 : index
    %88 = vector.load %arg14[%c0_43, %c0_44] : memref<1x64xf32, #tpu.memory_space<vmem>>, vector<1x64xf32>
    %89 = vector.broadcast %88 : vector<1x64xf32> to vector<8x64xf32>
    %90 = arith.addf %87, %89 : vector<8x64xf32>
    %cst_45 = arith.constant 0.000000e+00 : f32
    %91 = vector.broadcast %cst_45 : f32 to vector<8x64xf32>
    %92 = arith.maximumf %90, %91 : vector<8x64xf32>
    %c0_46 = arith.constant 0 : index
    %c0_47 = arith.constant 0 : index
    %93 = vector.load %arg15[%c0_46, %c0_47] : memref<64x15xf32, #tpu.memory_space<vmem>>, vector<64x15xf32>
    %cst_48 = arith.constant dense<0.000000e+00> : vector<8x15xf32>
    %94 = tpu.matmul %92, %93, %cst_48 {dimension_numbers = #tpu.dot_dimension_numbers<[1], [0], [0], [1], [0, 0, 1, 1], [], []>} : vector<8x64xf32>, vector<64x15xf32>, vector<8x15xf32> -> vector<8x15xf32>
    %c0_49 = arith.constant 0 : index
    %c0_50 = arith.constant 0 : index
    %95 = vector.load %arg16[%c0_49, %c0_50] : memref<1x15xf32, #tpu.memory_space<vmem>>, vector<1x15xf32>
    %96 = vector.broadcast %95 : vector<1x15xf32> to vector<8x15xf32>
    %97 = arith.addf %94, %96 : vector<8x15xf32>
    %98 = arith.mulf %46, %75 : vector<8x32xf32>
    %cst_51 = arith.constant dense<0.000000e+00> : vector<8xf32>
    %99 = vector.multi_reduction <add>, %98, %cst_51 [1] : vector<8x32xf32> to vector<8xf32>
    %100 = vector.shape_cast %99 : vector<8xf32> to vector<8x1xf32>
    %101 = vector.broadcast %11 : f32 to vector<8x1xf32>
    %102 = arith.mulf %101, %100 : vector<8x1xf32>
    %103 = arith.mulf %47, %75 : vector<8x32xf32>
    %cst_52 = arith.constant dense<0.000000e+00> : vector<8xf32>
    %104 = vector.multi_reduction <add>, %103, %cst_52 [1] : vector<8x32xf32> to vector<8xf32>
    %105 = vector.shape_cast %104 : vector<8xf32> to vector<8x1xf32>
    %106 = vector.broadcast %11 : f32 to vector<8x1xf32>
    %107 = arith.mulf %106, %105 : vector<8x1xf32>
    %108 = arith.mulf %48, %75 : vector<8x32xf32>
    %cst_53 = arith.constant dense<0.000000e+00> : vector<8xf32>
    %109 = vector.multi_reduction <add>, %108, %cst_53 [1] : vector<8x32xf32> to vector<8xf32>
    %110 = vector.shape_cast %109 : vector<8xf32> to vector<8x1xf32>
    %111 = vector.broadcast %11 : f32 to vector<8x1xf32>
    %112 = arith.mulf %111, %110 : vector<8x1xf32>
    %c0_54 = arith.constant 0 : index
    %c0_55 = arith.constant 0 : index
    %113 = vector.load %arg18[%c0_54, %c0_55] : memref<8x1xf32, #tpu.memory_space<vmem>>, vector<8x1xf32>
    %cst_56 = arith.constant 1.000000e+00 : f32
    %114 = vector.broadcast %cst_56 : f32 to vector<8x1xf32>
    %115 = arith.subf %113, %114 : vector<8x1xf32>
    %116 = vector.broadcast %12 : f32 to vector<8x1xf32>
    %117 = arith.mulf %116, %112 : vector<8x1xf32>
    %118 = arith.subf %107, %117 : vector<8x1xf32>
    %119 = arith.subf %118, %115 : vector<8x1xf32>
    %cst_57 = arith.constant dense<0xFF800000> : vector<1xf32>
    %120 = vector.multi_reduction <maximumf>, %119, %cst_57 [0] : vector<8x1xf32> to vector<1xf32>
    %121 = vector.shape_cast %120 : vector<1xf32> to vector<1x1xf32>
    %cst_58 = arith.constant 0.000000e+00 : f32
    %122 = vector.broadcast %cst_58 : f32 to vector<1x1xf32>
    %123 = arith.maximumf %121, %122 : vector<1x1xf32>
    %124 = vector.broadcast %123 : vector<1x1xf32> to vector<8x1xf32>
    %125 = arith.subf %119, %124 : vector<8x1xf32>
    %126 = math.exp %125 : vector<8x1xf32>
    %cst_59 = arith.constant dense<0.000000e+00> : vector<1xf32>
    %127 = vector.multi_reduction <add>, %126, %cst_59 [0] : vector<8x1xf32> to vector<1xf32>
    %128 = vector.shape_cast %127 : vector<1xf32> to vector<1x1xf32>
    %cst_60 = arith.constant 8.000000e+00 : f32
    %129 = vector.broadcast %cst_60 : f32 to vector<1x1xf32>
    %130 = arith.divf %128, %129 : vector<1x1xf32>
    %cst_61 = arith.constant dense<0.000000e+00> : vector<1xf32>
    %131 = vector.multi_reduction <add>, %102, %cst_61 [0] : vector<8x1xf32> to vector<1xf32>
    %132 = vector.shape_cast %131 : vector<1xf32> to vector<1x1xf32>
    %cst_62 = arith.constant 8.000000e+00 : f32
    %133 = vector.broadcast %cst_62 : f32 to vector<1x1xf32>
    %134 = arith.divf %132, %133 : vector<1x1xf32>
    %cst_63 = arith.constant 1.000000e+00 : f32
    %135 = arith.subf %cst_63, %12 : f32
    %cst_64 = arith.constant 0.000000e+00 : f32
    %136 = vector.broadcast %cst_64 : f32 to vector<1x1xf32>
    %137 = arith.subf %136, %134 : vector<1x1xf32>
    %138 = vector.broadcast %135 : f32 to vector<1x1xf32>
    %139 = arith.mulf %138, %137 : vector<1x1xf32>
    %cst_65 = arith.constant 0.000000e+00 : f32
    %140 = vector.broadcast %cst_65 : f32 to vector<1x1xf32>
    %141 = arith.subf %140, %123 : vector<1x1xf32>
    %142 = math.exp %141 : vector<1x1xf32>
    %cst_66 = arith.constant 9.99999993E-9 : f32
    %143 = vector.broadcast %cst_66 : f32 to vector<1x1xf32>
    %144 = arith.mulf %143, %142 : vector<1x1xf32>
    %145 = arith.addf %144, %130 : vector<1x1xf32>
    %146 = math.log %145 : vector<1x1xf32>
    %147 = arith.addf %123, %146 : vector<1x1xf32>
    %148 = arith.addf %139, %147 : vector<1x1xf32>
    %c0_67 = arith.constant 0 : index
    %c0_68 = arith.constant 0 : index
    %149 = vector.load %arg17[%c0_67, %c0_68] : memref<8x15xf32, #tpu.memory_space<vmem>>, vector<8x15xf32>
    %150 = arith.subf %97, %149 : vector<8x15xf32>
    %151 = arith.mulf %150, %150 : vector<8x15xf32>
    %152 = vector.shape_cast %151 : vector<8x15xf32> to vector<1x8x15xf32>
    %cst_69 = arith.constant dense<0.000000e+00> : vector<1xf32>
    %153 = vector.multi_reduction <add>, %152, %cst_69 [1, 2] : vector<1x8x15xf32> to vector<1xf32>
    %154 = vector.shape_cast %153 : vector<1xf32> to vector<1x1x1xf32>
    %155 = vector.extract %154[0, 0, 0] : f32 from vector<1x1x1xf32>
    %156 = vector.broadcast %155 : f32 to vector<1x1xf32>
    %cst_70 = arith.constant 1.200000e+02 : f32
    %157 = vector.broadcast %cst_70 : f32 to vector<1x1xf32>
    %158 = arith.divf %156, %157 : vector<1x1xf32>
    %159 = vector.broadcast %14 : f32 to vector<1x1xf32>
    %160 = arith.mulf %159, %148 : vector<1x1xf32>
    %161 = arith.mulf %15, %13 : f32
    %162 = vector.broadcast %161 : f32 to vector<1x1xf32>
    %163 = arith.mulf %162, %158 : vector<1x1xf32>
    %164 = arith.addf %160, %163 : vector<1x1xf32>
    %c0_71 = arith.constant 0 : index
    %c0_72 = arith.constant 0 : index
    %165 = vector.load %arg19[%c0_71, %c0_72] : memref<1x1xf32, #tpu.memory_space<vmem>>, vector<1x1xf32>
    tpu.vector_store %arg19[%c0_71, %c0_72], %164 {strides = array<i32>} : memref<1x1xf32, #tpu.memory_space<vmem>>, vector<1x1xf32>,
    return
  }
}

</mosaic_0001>

<llo_original>
// kernel: tpu_custom_call.1
$region0: #{tpu_custom_call.1}
  #allocation0 [shape = 'u32[]', space=smem, size = 0x4, offset = 0x4, fixed_abs, tag = 'smem constant byte address 0x4 - core index']
  #allocation1 [shape = 'u32[144,128]{1,0:T(1,128)}', space=vmem, size = 0x12000, scoped, tag = 'internal scratch']
  %s0 = inlined_call_operand.vmem [shape: f32[7], index: 0, kind: input, shape index: {}]
  %s1 = inlined_call_operand.vmem [shape: f32[8,32], index: 1, kind: input, shape index: {}]
  %s2 = inlined_call_operand.vmem [shape: f32[8,32], index: 2, kind: input, shape index: {}]
  %s3 = inlined_call_operand.vmem [shape: f32[8,32], index: 3, kind: input, shape index: {}]
  %s4 = inlined_call_operand.vmem [shape: f32[8,32], index: 4, kind: input, shape index: {}]
  %s5 = inlined_call_operand.vmem [shape: f32[32,64], index: 5, kind: input, shape index: {}]
  %s6 = inlined_call_operand.vmem [shape: f32[1,64], index: 6, kind: input, shape index: {}]
  %s7 = inlined_call_operand.vmem [shape: f32[64,32], index: 7, kind: input, shape index: {}]
  %s8 = inlined_call_operand.vmem [shape: f32[1,32], index: 8, kind: input, shape index: {}]
  %s9 = inlined_call_operand.vmem [shape: f32[32,64], index: 9, kind: input, shape index: {}]
  %s10 = inlined_call_operand.vmem [shape: f32[1,64], index: 10, kind: input, shape index: {}]
  %s11 = inlined_call_operand.vmem [shape: f32[64,32], index: 11, kind: input, shape index: {}]
  %s12 = inlined_call_operand.vmem [shape: f32[1,32], index: 12, kind: input, shape index: {}]
  %s13 = inlined_call_operand.vmem [shape: f32[128,64], index: 13, kind: input, shape index: {}]
  %s14 = inlined_call_operand.vmem [shape: f32[1,64], index: 14, kind: input, shape index: {}]
  %s15 = inlined_call_operand.vmem [shape: f32[64,15], index: 15, kind: input, shape index: {}]
  %s16 = inlined_call_operand.vmem [shape: f32[1,15], index: 16, kind: input, shape index: {}]
  %s17 = inlined_call_operand.vmem [shape: f32[8,15], index: 17, kind: input, shape index: {}]
  %s18 = inlined_call_operand.vmem [shape: f32[8,1], index: 18, kind: input, shape index: {}]
  %s19 = inlined_call_operand.hbm [shape: f32[1,1], index: 19, kind: output, shape index: {}]
  %s20 = sld [smem:[#allocation0]]
  $region90: #{tpu_custom_call.1} parent=0
    _
  %s22 = ssub.s32 1, %s20
  %s23 = scalar_select 0, %s22, %s20
  $region1: #{tpu_custom_call.1} parent=0
    #allocation2 [shape = 'u8[512]{0}', space=smem, size = 0x200, scoped, tag = 'input window, operand 0, single buffered']
    #allocation3 [shape = 's32[1]{0}', space=sflag, size = 0x4, scoped, tag = 'scoped memory for tpu_custom_call.1']
    #allocation4 [shape = 's32[1]{0}', space=sflag, size = 0x4, scoped, tag = 'scoped memory for tpu_custom_call.1']
    #allocation5 [shape = 'u8[512]{0}', space=vmem, size = 0x400, scoped, tag = 'output window, operand 0, single buffered']
    %24 = vsyncpa [#allocation4], 0
    %25 = vsyncpa [#allocation3], 0
    // Predicated region
    $region2: #{tpu_custom_call.1} parent=1 // pred_check
      _
    $region3: #{tpu_custom_call.1} parent=1 // pred_check_branch
      %27 = sbr.rel (0) target = $region5
    $region4: #{tpu_custom_call.1} parent=1 // pred_region
      %s29 = ssub.s32 16, 16
      %30 = vsyncadd [#allocation4], %s29
      %s32 = sshll.u32 %s0, 4
      %s33 = int_to_ptr.vmem [resolvable:$true] %s32
      %35 = dma.vmem_to_smem %s33, 16, [#allocation2], [#allocation4]
    $region5: #{tpu_custom_call.1} parent=1 // pred_fallthru
      _
    // Predicated region
    $region6: #{tpu_custom_call.1} parent=1 // pred_check
      _
    $region7: #{tpu_custom_call.1} parent=1 // pred_check_branch
      %37 = sbr.rel (0) target = $region9
    $region8: #{tpu_custom_call.1} parent=1 // pred_region
      _
    $region9: #{tpu_custom_call.1} parent=1 // pred_fallthru
      _
    // Predicated region
    $region10: #{tpu_custom_call.1} parent=1 // pred_check
      _
    $region11: #{tpu_custom_call.1} parent=1 // pred_check_branch
      %39 = sbr.rel (0) target = $region13
    $region12: #{tpu_custom_call.1} parent=1 // pred_region
      _
    $region13: #{tpu_custom_call.1} parent=1 // pred_fallthru
      _
    // Predicated region
    $region14: #{tpu_custom_call.1} parent=1 // pred_check
      _
    $region15: #{tpu_custom_call.1} parent=1 // pred_check_branch
      %41 = sbr.rel (0) target = $region17
    $region16: #{tpu_custom_call.1} parent=1 // pred_region
      _
    $region17: #{tpu_custom_call.1} parent=1 // pred_fallthru
      _
    // Predicated region
    $region18: #{tpu_custom_call.1} parent=1 // pred_check
      _
    $region19: #{tpu_custom_call.1} parent=1 // pred_check_branch
      %43 = sbr.rel (0) target = $region21
    $region20: #{tpu_custom_call.1} parent=1 // pred_region
      _
    $region21: #{tpu_custom_call.1} parent=1 // pred_fallthru
      _
    // Predicated region
    $region22: #{tpu_custom_call.1} parent=1 // pred_check
      _
    $region23: #{tpu_custom_call.1} parent=1 // pred_check_branch
      %45 = sbr.rel (0) target = $region25
    $region24: #{tpu_custom_call.1} parent=1 // pred_region
      _
    $region25: #{tpu_custom_call.1} parent=1 // pred_fallthru
      _
    // Predicated region
    $region26: #{tpu_custom_call.1} parent=1 // pred_check
      _
    $region27: #{tpu_custom_call.1} parent=1 // pred_check_branch
      %47 = sbr.rel (0) target = $region29
    $region28: #{tpu_custom_call.1} parent=1 // pred_region
      _
    $region29: #{tpu_custom_call.1} parent=1 // pred_fallthru
      _
    // Predicated region
    $region30: #{tpu_custom_call.1} parent=1 // pred_check
      _
    $region31: #{tpu_custom_call.1} parent=1 // pred_check_branch
      %49 = sbr.rel (0) target = $region33
    $region32: #{tpu_custom_call.1} parent=1 // pred_region
      _
    $region33: #{tpu_custom_call.1} parent=1 // pred_fallthru
      _
    // Predicated region
    $region34: #{tpu_custom_call.1} parent=1 // pred_check
      _
    $region35: #{tpu_custom_call.1} parent=1 // pred_check_branch
      %51 = sbr.rel (0) target = $region37
    $region36: #{tpu_custom_call.1} parent=1 // pred_region
      _
    $region37: #{tpu_custom_call.1} parent=1 // pred_fallthru
      _
    // Predicated region
    $region38: #{tpu_custom_call.1} parent=1 // pred_check
      _
    $region39: #{tpu_custom_call.1} parent=1 // pred_check_branch
      %53 = sbr.rel (0) target = $region41
    $region40: #{tpu_custom_call.1} parent=1 // pred_region
      _
    $region41: #{tpu_custom_call.1} parent=1 // pred_fallthru
      _
    // Predicated region
    $region42: #{tpu_custom_call.1} parent=1 // pred_check
      _
    $region43: #{tpu_custom_call.1} parent=1 // pred_check_branch
      %55 = sbr.rel (0) target = $region45
    $region44: #{tpu_custom_call.1} parent=1 // pred_region
      _
    $region45: #{tpu_custom_call.1} parent=1 // pred_fallthru
      _
    // Predicated region
    $region46: #{tpu_custom_call.1} parent=1 // pred_check
      _
    $region47: #{tpu_custom_call.1} parent=1 // pred_check_branch
      %57 = sbr.rel (0) target = $region49
    $region48: #{tpu_custom_call.1} parent=1 // pred_region
      _
    $region49: #{tpu_custom_call.1} parent=1 // pred_fallthru
      _
    // Predicated region
    $region50: #{tpu_custom_call.1} parent=1 // pred_check
      _
    $region51: #{tpu_custom_call.1} parent=1 // pred_check_branch
      %59 = sbr.rel (0) target = $region53
    $region52: #{tpu_custom_call.1} parent=1 // pred_region
      _
    $region53: #{tpu_custom_call.1} parent=1 // pred_fallthru
      _
    // Predicated region
    $region54: #{tpu_custom_call.1} parent=1 // pred_check
      _
    $region55: #{tpu_custom_call.1} parent=1 // pred_check_branch
      %61 = sbr.rel (0) target = $region57
    $region56: #{tpu_custom_call.1} parent=1 // pred_region
      _
    $region57: #{tpu_custom_call.1} parent=1 // pred_fallthru
      _
    // Predicated region
    $region58: #{tpu_custom_call.1} parent=1 // pred_check
      _
    $region59: #{tpu_custom_call.1} parent=1 // pred_check_branch
      %63 = sbr.rel (0) target = $region61
    $region60: #{tpu_custom_call.1} parent=1 // pred_region
      _
    $region61: #{tpu_custom_call.1} parent=1 // pred_fallthru
      _
    // Predicated region
    $region62: #{tpu_custom_call.1} parent=1 // pred_check
      _
    $region63: #{tpu_custom_call.1} parent=1 // pred_check_branch
      %65 = sbr.rel (0) target = $region65
    $region64: #{tpu_custom_call.1} parent=1 // pred_region
      _
    $region65: #{tpu_custom_call.1} parent=1 // pred_fallthru
      _
    // Predicated region
    $region66: #{tpu_custom_call.1} parent=1 // pred_check
      _
    $region67: #{tpu_custom_call.1} parent=1 // pred_check_branch
      %67 = sbr.rel (0) target = $region69
    $region68: #{tpu_custom_call.1} parent=1 // pred_region
      _
    $region69: #{tpu_custom_call.1} parent=1 // pred_fallthru
      _
    // Predicated region
    $region70: #{tpu_custom_call.1} parent=1 // pred_check
      _
    $region71: #{tpu_custom_call.1} parent=1 // pred_check_branch
      %69 = sbr.rel (0) target = $region73
    $region72: #{tpu_custom_call.1} parent=1 // pred_region
      _
    $region73: #{tpu_custom_call.1} parent=1 // pred_fallthru
      _
    // Predicated region
    $region74: #{tpu_custom_call.1} parent=1 // pred_check
      _
    $region75: #{tpu_custom_call.1} parent=1 // pred_check_branch
      %71 = sbr.rel (0) target = $region77
    $region76: #{tpu_custom_call.1} parent=1 // pred_region
      _
    $region77: #{tpu_custom_call.1} parent=1 // pred_fallthru
      _
    // Predicated region
    $region78: #{tpu_custom_call.1} parent=1 // pred_check
      _
    $region79: #{tpu_custom_call.1} parent=1 // pred_check_branch
      %73 = sbr.rel (0) target = $region81
    $region80: #{tpu_custom_call.1} parent=1 // pred_region
      %74 = dma.done [#allocation4], 16
    $region81: #{tpu_custom_call.1} parent=1 // pred_fallthru
      _
    %75 = sfence
    %s76 = sld [smem:[#allocation2]]
    %s77 = sxor.u32 %s76, 2147483648
    %v78 = vstv %s77
    %v79 = vmul.f32 %v78, 1.442695
    %v80 = vpow.pop %v79
    %s81 = vtos %v80
    %s82 = sadd.f32 %s81, 1.0
    %v83 = vstv %s82
    %v84 = vrcp.pop %v83
    %s85 = vtos %v84
    %s86 = sld [smem:[#allocation2 + $0x1]]
    %s87 = sxor.u32 %s86, 2147483648
    %v88 = vstv %s87
    %v89 = vmul.f32 %v88, 1.442695
    %v90 = vpow.pop %v89
    %s91 = vtos %v90
    %s92 = sadd.f32 %s91, 1.0
    %v93 = vstv %s92
    %v94 = vrcp.pop %v93
    %s95 = vtos %v94
    %s96 = sld [smem:[#allocation2 + $0x2]]
    %v97 = vstv %s96
    %v98 = vmul.f32 %v97, 1.442695
    %v99 = vpow.pop %v98
    %s100 = vtos %v99
    %s101 = sld [smem:[#allocation2 + $0x3]]
    %s102 = sld [smem:[#allocation2 + $0x4]]
    %s103 = sld [smem:[#allocation2 + $0x5]]
    %s104 = sld [smem:[#allocation2 + $0x6]]
    %v105 = vld [vmem:[%s1] sm:$0xff]
    %v106 = vld [vmem:[%s2] sm:$0xff]
    %v107 = vld [vmem:[%s3] sm:$0xff]
    %v108 = vld [vmem:[%s5] sm:$0xff]
    %v109 = vld [vmem:[%s5 + $0x8] sm:$0xff]
    %v110 = vld [vmem:[%s5 + $0x10] sm:$0xff]
    %v111 = vld [vmem:[%s5 + $0x18] sm:$0xff]
    %v112 = vld [vmem:[%s6] sm:$0x1]
    %v113 = vld [vmem:[%s7] sm:$0xff]
    %v114 = vld [vmem:[%s7 + $0x8] sm:$0xff]
    %v115 = vld [vmem:[%s7 + $0x10] sm:$0xff]
    %v116 = vld [vmem:[%s7 + $0x18] sm:$0xff]
    %v117 = vld [vmem:[%s7 + $0x20] sm:$0xff]
    %v118 = vld [vmem:[%s7 + $0x28] sm:$0xff]
    %v119 = vld [vmem:[%s7 + $0x30] sm:$0xff]
    %v120 = vld [vmem:[%s7 + $0x38] sm:$0xff]
    %v121 = vld [vmem:[%s8] sm:$0x1]
    %v123 = vlaneseq
    %v124 = vshrl.u32 %v123, 7
    %v125 = vsub.s32 0, %v124
    %v126 = vrot.slane %v112, %v125
    %vm128 = vcmask 261120
    %v130 = vsel %vm128, %v105, 0
    %v133 = vsel %vm128, %v106, 0
    %v136 = vsel %vm128, %v107, 0
    %138 = vmatprep.subr.mxu0 0.0
    %139 = vmatpush1.msra.mxu0 0.0
    %140 = vmatprep.subr.mxu0 0.0
    %141 = vmatpush1.msra.mxu0 0.0
    %142 = vmatprep.subr.mxu0 0.0
    %143 = vmatpush1.msra.mxu0 0.0
    %144 = vmatprep.subr.mxu0 0.0
    %145 = vmatpush1.msra.mxu0 0.0
    %146 = vmatprep.subr.mxu0 0.0
    %147 = vmatpush1.msra.mxu0 0.0
    %148 = vmatprep.subr.mxu0 0.0
    %149 = vmatpush1.msra.mxu0 0.0
    %150 = vmatprep.subr.mxu0 0.0
    %151 = vmatpush1.msra.mxu0 0.0
    %152 = vmatprep.subr.mxu0 0.0
    %153 = vmatpush1.msra.mxu0 0.0
    %154 = vmatprep.subr.mxu0 0.0
    %155 = vmatpush1.msra.mxu0 0.0
    %156 = vmatprep.subr.mxu0 0.0
    %157 = vmatpush1.msra.mxu0 0.0
    %158 = vmatprep.subr.mxu0 0.0
    %159 = vmatpush1.msra.mxu0 0.0
    %160 = vmatprep.subr.mxu0 0.0
    %161 = vmatpush1.msra.mxu0 0.0
    %162 = vmatprep.subr.mxu0 0.0
    %163 = vmatpush1.msra.mxu0 %v111
    %164 = vmatprep.subr.mxu0 0.0
    %165 = vmatpush1.msra.mxu0 %v110
    %166 = vmatprep.subr.mxu0 0.0
    %167 = vmatpush1.msra.mxu0 %v109
    %168 = vmatprep.subr.mxu0 0.0
    %169 = vmatpush1.msra.mxu0 %v108
    %170 = vmatprep.subr.mxu0 0.0
    %171 = vmatpush2.msra.mxu0 0.0
    %172 = vmatprep.subr.mxu0 0.0
    %173 = vmatpush2.msra.mxu0 0.0
    %174 = vmatprep.subr.mxu0 0.0
    %175 = vmatpush2.msra.mxu0 0.0
    %176 = vmatprep.subr.mxu0 0.0
    %177 = vmatpush2.msra.mxu0 0.0
    %178 = vmatprep.subr.mxu0 0.0
    %179 = vmatpush2.msra.mxu0 0.0
    %180 = vmatprep.subr.mxu0 0.0
    %181 = vmatpush2.msra.mxu0 0.0
    %182 = vmatprep.subr.mxu0 0.0
    %183 = vmatpush2.msra.mxu0 0.0
    %184 = vmatprep.subr.mxu0 0.0
    %185 = vmatpush2.msra.mxu0 0.0
    %186 = vmatprep.subr.mxu0 0.0
    %187 = vmatpush2.msra.mxu0 0.0
    %188 = vmatprep.subr.mxu0 0.0
    %189 = vmatpush2.msra.mxu0 0.0
    %190 = vmatprep.subr.mxu0 0.0
    %191 = vmatpush2.msra.mxu0 0.0
    %192 = vmatprep.subr.mxu0 0.0
    %193 = vmatpush2.msra.mxu0 0.0
    %194 = vmatprep.subr.mxu0 0.0
    %195 = vmatpush2.msra.mxu0 0.0
    %196 = vmatprep.subr.mxu0 0.0
    %197 = vmatpush2.msra.mxu0 0.0
    %198 = vmatprep.subr.mxu0 0.0
    %199 = vmatpush2.msra.mxu0 0.0
    %200 = vmatprep.subr.mxu0 0.0
    %201 = vmatpush2.msra.mxu0 0.0
    %202 = vmatprep.mubr.f32.mxu0 0.0
    %203 = vmatmul.mubr.f32.gmra.mxu0 %v130
    %v204 = vpop.f32.mrf.mxu0
    %v205 = vadd.f32 %v126, %v204
    %v206 = vpop.f32.mrf.mxu0
    %207 = vmatprep.mubr.f32.mxu0 0.0
    %208 = vmatmul.mubr.f32.gmra.mxu0 %v133
    %v209 = vpop.f32.mrf.mxu0
    %v210 = vadd.f32 %v126, %v209
    %v211 = vpop.f32.mrf.mxu0
    %212 = vmatprep.mubr.f32.mxu0 0.0
    %213 = vmatmul.mubr.f32.gmra.mxu0 %v136
    %v214 = vpop.f32.mrf.mxu0
    %v215 = vadd.f32 %v126, %v214
    %v216 = vpop.f32.mrf.mxu0
    %217 = vdwg.mxu0
    %v218 = vmax.f32 %v205, 0.0
    %v219 = vmax.f32 %v210, 0.0
    %v220 = vmax.f32 %v215, 0.0
    %v222 = vlaneseq
    %v223 = vshrl.u32 %v222, 7
    %v224 = vsub.s32 0, %v223
    %v225 = vrot.slane %v121, %v224
    %vm227 = vcmask 523264
    %v229 = vsel %vm227, %v218, 0
    %v232 = vsel %vm227, %v219, 0
    %v235 = vsel %vm227, %v220, 0
    %237 = vmatprep.subr.mxu0 0.0
    %238 = vmatpush1.msra.mxu0 0.0
    %239 = vmatprep.subr.mxu0 0.0
    %240 = vmatpush1.msra.mxu0 0.0
    %241 = vmatprep.subr.mxu0 0.0
    %242 = vmatpush1.msra.mxu0 0.0
    %243 = vmatprep.subr.mxu0 0.0
    %244 = vmatpush1.msra.mxu0 0.0
    %245 = vmatprep.subr.mxu0 0.0
    %246 = vmatpush1.msra.mxu0 0.0
    %247 = vmatprep.subr.mxu0 0.0
    %248 = vmatpush1.msra.mxu0 0.0
    %249 = vmatprep.subr.mxu0 0.0
    %250 = vmatpush1.msra.mxu0 0.0
    %251 = vmatprep.subr.mxu0 0.0
    %252 = vmatpush1.msra.mxu0 0.0
    %253 = vmatprep.subr.mxu0 0.0
    %254 = vmatpush1.msra.mxu0 %v120
    %255 = vmatprep.subr.mxu0 0.0
    %256 = vmatpush1.msra.mxu0 %v119
    %257 = vmatprep.subr.mxu0 0.0
    %258 = vmatpush1.msra.mxu0 %v118
    %259 = vmatprep.subr.mxu0 0.0
    %260 = vmatpush1.msra.mxu0 %v117
    %261 = vmatprep.subr.mxu0 0.0
    %262 = vmatpush1.msra.mxu0 %v116
    %263 = vmatprep.subr.mxu0 0.0
    %264 = vmatpush1.msra.mxu0 %v115
    %265 = vmatprep.subr.mxu0 0.0
    %266 = vmatpush1.msra.mxu0 %v114
    %267 = vmatprep.subr.mxu0 0.0
    %268 = vmatpush1.msra.mxu0 %v113
    %269 = vmatprep.subr.mxu0 0.0
    %270 = vmatpush2.msra.mxu0 0.0
    %271 = vmatprep.subr.mxu0 0.0
    %272 = vmatpush2.msra.mxu0 0.0
    %273 = vmatprep.subr.mxu0 0.0
    %274 = vmatpush2.msra.mxu0 0.0
    %275 = vmatprep.subr.mxu0 0.0
    %276 = vmatpush2.msra.mxu0 0.0
    %277 = vmatprep.subr.mxu0 0.0
    %278 = vmatpush2.msra.mxu0 0.0
    %279 = vmatprep.subr.mxu0 0.0
    %280 = vmatpush2.msra.mxu0 0.0
    %281 = vmatprep.subr.mxu0 0.0
    %282 = vmatpush2.msra.mxu0 0.0
    %283 = vmatprep.subr.mxu0 0.0
    %284 = vmatpush2.msra.mxu0 0.0
    %285 = vmatprep.subr.mxu0 0.0
    %286 = vmatpush2.msra.mxu0 0.0
    %287 = vmatprep.subr.mxu0 0.0
    %288 = vmatpush2.msra.mxu0 0.0
    %289 = vmatprep.subr.mxu0 0.0
    %290 = vmatpush2.msra.mxu0 0.0
    %291 = vmatprep.subr.mxu0 0.0
    %292 = vmatpush2.msra.mxu0 0.0
    %293 = vmatprep.subr.mxu0 0.0
    %294 = vmatpush2.msra.mxu0 0.0
    %295 = vmatprep.subr.mxu0 0.0
    %296 = vmatpush2.msra.mxu0 0.0
    %297 = vmatprep.subr.mxu0 0.0
    %298 = vmatpush2.msra.mxu0 0.0
    %299 = vmatprep.subr.mxu0 0.0
    %300 = vmatpush2.msra.mxu0 0.0
    %301 = vmatprep.mubr.f32.mxu0 0.0
    %302 = vmatmul.mubr.f32.gmra.mxu0 %v229
    %v303 = vpop.f32.mrf.mxu0
    %v304 = vadd.f32 %v225, %v303
    %v305 = vpop.f32.mrf.mxu0
    %306 = vmatprep.mubr.f32.mxu0 0.0
    %307 = vmatmul.mubr.f32.gmra.mxu0 %v232
    %v308 = vpop.f32.mrf.mxu0
    %v309 = vadd.f32 %v225, %v308
    %v310 = vpop.f32.mrf.mxu0
    %311 = vmatprep.mubr.f32.mxu0 0.0
    %312 = vmatmul.mubr.f32.gmra.mxu0 %v235
    %v313 = vpop.f32.mrf.mxu0
    %v314 = vadd.f32 %v225, %v313
    %v315 = vpop.f32.mrf.mxu0
    %316 = vdwg.mxu0
    %v317 = vstv %s85
    %v318 = vmul.f32 %v317, %v105
    %v319 = vmul.f32 %v317, %v106
    %v320 = vmul.f32 %v317, %v107
    %s321 = ssub.f32 1.0, %s85
    %v322 = vstv %s321
    %v323 = vmul.f32 %v322, %v304
    %v324 = vmul.f32 %v322, %v309
    %v325 = vmul.f32 %v322, %v314
    %v326 = vadd.f32 %v318, %v323
    %v327 = vadd.f32 %v319, %v324
    %v328 = vadd.f32 %v320, %v325
    %v329 = vmul.f32 %v326, %v326
    %v330 = vmul.f32 %v327, %v327
    %v331 = vmul.f32 %v328, %v328
    %v332 = vsel %vm128, %v329, 0.0
    %333 = vadd.xlane.f32.xlu0 %v332
    %v334 = vpop.xlane.xlu0 %333
    %v335 = vsel %vm128, %v330, 0.0
    %336 = vadd.xlane.f32.xlu0 %v335
    %v337 = vpop.xlane.xlu0 %336
    %v338 = vsel %vm128, %v331, 0.0
    %339 = vadd.xlane.f32.xlu0 %v338
    %v340 = vpop.xlane.xlu0 %339
    %v341 = vrsqrt.pop %v334
    %v342 = vmul.f32 %v334, %v341
    %vm343 = vcmp.eq.f32.partialorder %v334, inf
    %v344 = vsel %vm343, %v334, %v342
    %vm345 = vcmp.eq.f32.partialorder %v334, 0.0
    %v346 = vand.u32 %v334, 2147483648
    %v347 = vsel %vm345, %v346, %v344
    %v348 = vrsqrt.pop %v337
    %v349 = vmul.f32 %v337, %v348
    %vm350 = vcmp.eq.f32.partialorder %v337, inf
    %v351 = vsel %vm350, %v337, %v349
    %vm352 = vcmp.eq.f32.partialorder %v337, 0.0
    %v353 = vand.u32 %v337, 2147483648
    %v354 = vsel %vm352, %v353, %v351
    %v355 = vrsqrt.pop %v340
    %v356 = vmul.f32 %v340, %v355
    %vm357 = vcmp.eq.f32.partialorder %v340, inf
    %v358 = vsel %vm357, %v340, %v356
    %vm359 = vcmp.eq.f32.partialorder %v340, 0.0
    %v360 = vand.u32 %v340, 2147483648
    %v361 = vsel %vm359, %v360, %v358
    %v362 = vmax.f32 %v347, 1e-12
    %v363 = vmax.f32 %v354, 1e-12
    %v364 = vmax.f32 %v361, 1e-12
    %v365 = vrcp.pop %v362
    %v366 = vmul.f32 %v326, %v365
    %v367 = vrcp.pop %v363
    %v368 = vmul.f32 %v327, %v367
    %v369 = vrcp.pop %v364
    %v370 = vmul.f32 %v328, %v369
    %v371 = vld [vmem:[%s4] sm:$0xff]
    %v372 = vld [vmem:[%s9] sm:$0xff]
    %v373 = vld [vmem:[%s9 + $0x8] sm:$0xff]
    %v374 = vld [vmem:[%s9 + $0x10] sm:$0xff]
    %v375 = vld [vmem:[%s9 + $0x18] sm:$0xff]
    %v376 = vld [vmem:[%s10] sm:$0x1]
    %v377 = vld [vmem:[%s11] sm:$0xff]
    %v378 = vld [vmem:[%s11 + $0x8] sm:$0xff]
    %v379 = vld [vmem:[%s11 + $0x10] sm:$0xff]
    %v380 = vld [vmem:[%s11 + $0x18] sm:$0xff]
    %v381 = vld [vmem:[%s11 + $0x20] sm:$0xff]
    %v382 = vld [vmem:[%s11 + $0x28] sm:$0xff]
    %v383 = vld [vmem:[%s11 + $0x30] sm:$0xff]
    %v384 = vld [vmem:[%s11 + $0x38] sm:$0xff]
    %v385 = vld [vmem:[%s12] sm:$0x1]
    %v387 = vlaneseq
    %v388 = vshrl.u32 %v387, 7
    %v389 = vsub.s32 0, %v388
    %v390 = vrot.slane %v376, %v389
    %v393 = vsel %vm128, %v371, 0
    %395 = vmatprep.subr.mxu0 0.0
    %396 = vmatpush1.msra.mxu0 0.0
    %397 = vmatprep.subr.mxu0 0.0
    %398 = vmatpush1.msra.mxu0 0.0
    %399 = vmatprep.subr.mxu0 0.0
    %400 = vmatpush1.msra.mxu0 0.0
    %401 = vmatprep.subr.mxu0 0.0
    %402 = vmatpush1.msra.mxu0 0.0
    %403 = vmatprep.subr.mxu0 0.0
    %404 = vmatpush1.msra.mxu0 0.0
    %405 = vmatprep.subr.mxu0 0.0
    %406 = vmatpush1.msra.mxu0 0.0
    %407 = vmatprep.subr.mxu0 0.0
    %408 = vmatpush1.msra.mxu0 0.0
    %409 = vmatprep.subr.mxu0 0.0
    %410 = vmatpush1.msra.mxu0 0.0
    %411 = vmatprep.subr.mxu0 0.0
    %412 = vmatpush1.msra.mxu0 0.0
    %413 = vmatprep.subr.mxu0 0.0
    %414 = vmatpush1.msra.mxu0 0.0
    %415 = vmatprep.subr.mxu0 0.0
    %416 = vmatpush1.msra.mxu0 0.0
    %417 = vmatprep.subr.mxu0 0.0
    %418 = vmatpush1.msra.mxu0 0.0
    %419 = vmatprep.subr.mxu0 0.0
    %420 = vmatpush1.msra.mxu0 %v375
    %421 = vmatprep.subr.mxu0 0.0
    %422 = vmatpush1.msra.mxu0 %v374
    %423 = vmatprep.subr.mxu0 0.0
    %424 = vmatpush1.msra.mxu0 %v373
    %425 = vmatprep.subr.mxu0 0.0
    %426 = vmatpush1.msra.mxu0 %v372
    %427 = vmatprep.subr.mxu0 0.0
    %428 = vmatpush2.msra.mxu0 0.0
    %429 = vmatprep.subr.mxu0 0.0
    %430 = vmatpush2.msra.mxu0 0.0
    %431 = vmatprep.subr.mxu0 0.0
    %432 = vmatpush2.msra.mxu0 0.0
    %433 = vmatprep.subr.mxu0 0.0
    %434 = vmatpush2.msra.mxu0 0.0
    %435 = vmatprep.subr.mxu0 0.0
    %436 = vmatpush2.msra.mxu0 0.0
    %437 = vmatprep.subr.mxu0 0.0
    %438 = vmatpush2.msra.mxu0 0.0
    %439 = vmatprep.subr.mxu0 0.0
    %440 = vmatpush2.msra.mxu0 0.0
    %441 = vmatprep.subr.mxu0 0.0
    %442 = vmatpush2.msra.mxu0 0.0
    %443 = vmatprep.subr.mxu0 0.0
    %444 = vmatpush2.msra.mxu0 0.0
    %445 = vmatprep.subr.mxu0 0.0
    %446 = vmatpush2.msra.mxu0 0.0
    %447 = vmatprep.subr.mxu0 0.0
    %448 = vmatpush2.msra.mxu0 0.0
    %449 = vmatprep.subr.mxu0 0.0
    %450 = vmatpush2.msra.mxu0 0.0
    %451 = vmatprep.subr.mxu0 0.0
    %452 = vmatpush2.msra.mxu0 0.0
    %453 = vmatprep.subr.mxu0 0.0
    %454 = vmatpush2.msra.mxu0 0.0
    %455 = vmatprep.subr.mxu0 0.0
    %456 = vmatpush2.msra.mxu0 0.0
    %457 = vmatprep.subr.mxu0 0.0
    %458 = vmatpush2.msra.mxu0 0.0
    %459 = vmatprep.mubr.f32.mxu0 0.0
    %460 = vmatmul.mubr.f32.gmra.mxu0 %v393
    %v461 = vpop.f32.mrf.mxu0
    %v462 = vadd.f32 %v390, %v461
    %v463 = vpop.f32.mrf.mxu0
    %464 = vdwg.mxu0
    %v465 = vmax.f32 %v462, 0.0
    %v467 = vlaneseq
    %v468 = vshrl.u32 %v467, 7
    %v469 = vsub.s32 0, %v468
    %v470 = vrot.slane %v385, %v469
    %v473 = vsel %vm227, %v465, 0
    %475 = vmatprep.subr.mxu0 0.0
    %476 = vmatpush1.msra.mxu0 0.0
    %477 = vmatprep.subr.mxu0 0.0
    %478 = vmatpush1.msra.mxu0 0.0
    %479 = vmatprep.subr.mxu0 0.0
    %480 = vmatpush1.msra.mxu0 0.0
    %481 = vmatprep.subr.mxu0 0.0
    %482 = vmatpush1.msra.mxu0 0.0
    %483 = vmatprep.subr.mxu0 0.0
    %484 = vmatpush1.msra.mxu0 0.0
    %485 = vmatprep.subr.mxu0 0.0
    %486 = vmatpush1.msra.mxu0 0.0
    %487 = vmatprep.subr.mxu0 0.0
    %488 = vmatpush1.msra.mxu0 0.0
    %489 = vmatprep.subr.mxu0 0.0
    %490 = vmatpush1.msra.mxu0 0.0
    %491 = vmatprep.subr.mxu0 0.0
    %492 = vmatpush1.msra.mxu0 %v384
    %493 = vmatprep.subr.mxu0 0.0
    %494 = vmatpush1.msra.mxu0 %v383
    %495 = vmatprep.subr.mxu0 0.0
    %496 = vmatpush1.msra.mxu0 %v382
    %497 = vmatprep.subr.mxu0 0.0
    %498 = vmatpush1.msra.mxu0 %v381
    %499 = vmatprep.subr.mxu0 0.0
    %500 = vmatpush1.msra.mxu0 %v380
    %501 = vmatprep.subr.mxu0 0.0
    %502 = vmatpush1.msra.mxu0 %v379
    %503 = vmatprep.subr.mxu0 0.0
    %504 = vmatpush1.msra.mxu0 %v378
    %505 = vmatprep.subr.mxu0 0.0
    %506 = vmatpush1.msra.mxu0 %v377
    %507 = vmatprep.subr.mxu0 0.0
    %508 = vmatpush2.msra.mxu0 0.0
    %509 = vmatprep.subr.mxu0 0.0
    %510 = vmatpush2.msra.mxu0 0.0
    %511 = vmatprep.subr.mxu0 0.0
    %512 = vmatpush2.msra.mxu0 0.0
    %513 = vmatprep.subr.mxu0 0.0
    %514 = vmatpush2.msra.mxu0 0.0
    %515 = vmatprep.subr.mxu0 0.0
    %516 = vmatpush2.msra.mxu0 0.0
    %517 = vmatprep.subr.mxu0 0.0
    %518 = vmatpush2.msra.mxu0 0.0
    %519 = vmatprep.subr.mxu0 0.0
    %520 = vmatpush2.msra.mxu0 0.0
    %521 = vmatprep.subr.mxu0 0.0
    %522 = vmatpush2.msra.mxu0 0.0
    %523 = vmatprep.subr.mxu0 0.0
    %524 = vmatpush2.msra.mxu0 0.0
    %525 = vmatprep.subr.mxu0 0.0
    %526 = vmatpush2.msra.mxu0 0.0
    %527 = vmatprep.subr.mxu0 0.0
    %528 = vmatpush2.msra.mxu0 0.0
    %529 = vmatprep.subr.mxu0 0.0
    %530 = vmatpush2.msra.mxu0 0.0
    %531 = vmatprep.subr.mxu0 0.0
    %532 = vmatpush2.msra.mxu0 0.0
    %533 = vmatprep.subr.mxu0 0.0
    %534 = vmatpush2.msra.mxu0 0.0
    %535 = vmatprep.subr.mxu0 0.0
    %536 = vmatpush2.msra.mxu0 0.0
    %537 = vmatprep.subr.mxu0 0.0
    %538 = vmatpush2.msra.mxu0 0.0
    %539 = vmatprep.mubr.f32.mxu0 0.0
    %540 = vmatmul.mubr.f32.gmra.mxu0 %v473
    %v541 = vpop.f32.mrf.mxu0
    %v542 = vadd.f32 %v470, %v541
    %v543 = vpop.f32.mrf.mxu0
    %544 = vdwg.mxu0
    %v545 = vstv %s95
    %v546 = vmul.f32 %v545, %v371
    %s547 = ssub.f32 1.0, %s95
    %v548 = vstv %s547
    %v549 = vmul.f32 %v548, %v542
    %v550 = vadd.f32 %v546, %v549
    %v551 = vmul.f32 %v550, %v550
    %v552 = vsel %vm128, %v551, 0.0
    %553 = vadd.xlane.f32.xlu0 %v552
    %v554 = vpop.xlane.xlu0 %553
    %v555 = vrsqrt.pop %v554
    %v556 = vmul.f32 %v554, %v555
    %vm557 = vcmp.eq.f32.partialorder %v554, inf
    %v558 = vsel %vm557, %v554, %v556
    %vm559 = vcmp.eq.f32.partialorder %v554, 0.0
    %v560 = vand.u32 %v554, 2147483648
    %v561 = vsel %vm559, %v560, %v558
    %v562 = vmax.f32 %v561, 1e-12
    %v563 = vrcp.pop %v562
    %v564 = vmul.f32 %v550, %v563
    %v565 = vld [vmem:[%s13] sm:$0xff]
    %v566 = vld [vmem:[%s13 + $0x8] sm:$0xff]
    %v567 = vld [vmem:[%s13 + $0x10] sm:$0xff]
    %v568 = vld [vmem:[%s13 + $0x18] sm:$0xff]
    %v569 = vld [vmem:[%s13 + $0x20] sm:$0xff]
    %v570 = vld [vmem:[%s13 + $0x28] sm:$0xff]
    %v571 = vld [vmem:[%s13 + $0x30] sm:$0xff]
    %v572 = vld [vmem:[%s13 + $0x38] sm:$0xff]
    %v573 = vld [vmem:[%s13 + $0x40] sm:$0xff]
    %v574 = vld [vmem:[%s13 + $0x48] sm:$0xff]
    %v575 = vld [vmem:[%s13 + $0x50] sm:$0xff]
    %v576 = vld [vmem:[%s13 + $0x58] sm:$0xff]
    %v577 = vld [vmem:[%s13 + $0x60] sm:$0xff]
    %v578 = vld [vmem:[%s13 + $0x68] sm:$0xff]
    %v579 = vld [vmem:[%s13 + $0x70] sm:$0xff]
    %v580 = vld [vmem:[%s13 + $0x78] sm:$0xff]
    %v582 = vsel %vm128, %v564, 0
    %584 = vmatprep.subr.mxu0 0.0
    %585 = vmatpush1.msra.mxu0 0.0
    %586 = vmatprep.subr.mxu0 0.0
    %587 = vmatpush1.msra.mxu0 0.0
    %588 = vmatprep.subr.mxu0 0.0
    %589 = vmatpush1.msra.mxu0 0.0
    %590 = vmatprep.subr.mxu0 0.0
    %591 = vmatpush1.msra.mxu0 0.0
    %592 = vmatprep.subr.mxu0 0.0
    %593 = vmatpush1.msra.mxu0 0.0
    %594 = vmatprep.subr.mxu0 0.0
    %595 = vmatpush1.msra.mxu0 0.0
    %596 = vmatprep.subr.mxu0 0.0
    %597 = vmatpush1.msra.mxu0 0.0
    %598 = vmatprep.subr.mxu0 0.0
    %599 = vmatpush1.msra.mxu0 0.0
    %600 = vmatprep.subr.mxu0 0.0
    %601 = vmatpush1.msra.mxu0 0.0
    %602 = vmatprep.subr.mxu0 0.0
    %603 = vmatpush1.msra.mxu0 0.0
    %604 = vmatprep.subr.mxu0 0.0
    %605 = vmatpush1.msra.mxu0 0.0
    %606 = vmatprep.subr.mxu0 0.0
    %607 = vmatpush1.msra.mxu0 0.0
    %608 = vmatprep.subr.mxu0 0.0
    %609 = vmatpush1.msra.mxu0 %v572
    %610 = vmatprep.subr.mxu0 0.0
    %611 = vmatpush1.msra.mxu0 %v571
    %612 = vmatprep.subr.mxu0 0.0
    %613 = vmatpush1.msra.mxu0 %v570
    %614 = vmatprep.subr.mxu0 0.0
    %615 = vmatpush1.msra.mxu0 %v569
    %616 = vmatprep.subr.mxu0 0.0
    %617 = vmatpush2.msra.mxu0 0.0
    %618 = vmatprep.subr.mxu0 0.0
    %619 = vmatpush2.msra.mxu0 0.0
    %620 = vmatprep.subr.mxu0 0.0
    %621 = vmatpush2.msra.mxu0 0.0
    %622 = vmatprep.subr.mxu0 0.0
    %623 = vmatpush2.msra.mxu0 0.0
    %624 = vmatprep.subr.mxu0 0.0
    %625 = vmatpush2.msra.mxu0 0.0
    %626 = vmatprep.subr.mxu0 0.0
    %627 = vmatpush2.msra.mxu0 0.0
    %628 = vmatprep.subr.mxu0 0.0
    %629 = vmatpush2.msra.mxu0 0.0
    %630 = vmatprep.subr.mxu0 0.0
    %631 = vmatpush2.msra.mxu0 0.0
    %632 = vmatprep.subr.mxu0 0.0
    %633 = vmatpush2.msra.mxu0 0.0
    %634 = vmatprep.subr.mxu0 0.0
    %635 = vmatpush2.msra.mxu0 0.0
    %636 = vmatprep.subr.mxu0 0.0
    %637 = vmatpush2.msra.mxu0 0.0
    %638 = vmatprep.subr.mxu0 0.0
    %639 = vmatpush2.msra.mxu0 0.0
    %640 = vmatprep.subr.mxu0 0.0
    %641 = vmatpush2.msra.mxu0 0.0
    %642 = vmatprep.subr.mxu0 0.0
    %643 = vmatpush2.msra.mxu0 0.0
    %644 = vmatprep.subr.mxu0 0.0
    %645 = vmatpush2.msra.mxu0 0.0
    %646 = vmatprep.subr.mxu0 0.0
    %647 = vmatpush2.msra.mxu0 0.0
    %648 = vmatprep.mubr.f32.mxu0 0.0
    %649 = vmatmul.mubr.f32.gmra.mxu0 %v582
    %v650 = vpop.f32.mrf.mxu0
    %v651 = vadd.f32 0.0, %v650
    %v652 = vpop.f32.mrf.mxu0
    %653 = vdwg.mxu0
    %v655 = vsel %vm128, %v368, 0
    %657 = vmatprep.subr.mxu0 0.0
    %658 = vmatpush1.msra.mxu0 0.0
    %659 = vmatprep.subr.mxu0 0.0
    %660 = vmatpush1.msra.mxu0 0.0
    %661 = vmatprep.subr.mxu0 0.0
    %662 = vmatpush1.msra.mxu0 0.0
    %663 = vmatprep.subr.mxu0 0.0
    %664 = vmatpush1.msra.mxu0 0.0
    %665 = vmatprep.subr.mxu0 0.0
    %666 = vmatpush1.msra.mxu0 0.0
    %667 = vmatprep.subr.mxu0 0.0
    %668 = vmatpush1.msra.mxu0 0.0
    %669 = vmatprep.subr.mxu0 0.0
    %670 = vmatpush1.msra.mxu0 0.0
    %671 = vmatprep.subr.mxu0 0.0
    %672 = vmatpush1.msra.mxu0 0.0
    %673 = vmatprep.subr.mxu0 0.0
    %674 = vmatpush1.msra.mxu0 0.0
    %675 = vmatprep.subr.mxu0 0.0
    %676 = vmatpush1.msra.mxu0 0.0
    %677 = vmatprep.subr.mxu0 0.0
    %678 = vmatpush1.msra.mxu0 0.0
    %679 = vmatprep.subr.mxu0 0.0
    %680 = vmatpush1.msra.mxu0 0.0
    %681 = vmatprep.subr.mxu0 0.0
    %682 = vmatpush1.msra.mxu0 %v568
    %683 = vmatprep.subr.mxu0 0.0
    %684 = vmatpush1.msra.mxu0 %v567
    %685 = vmatprep.subr.mxu0 0.0
    %686 = vmatpush1.msra.mxu0 %v566
    %687 = vmatprep.subr.mxu0 0.0
    %688 = vmatpush1.msra.mxu0 %v565
    %689 = vmatprep.subr.mxu0 0.0
    %690 = vmatpush2.msra.mxu0 0.0
    %691 = vmatprep.subr.mxu0 0.0
    %692 = vmatpush2.msra.mxu0 0.0
    %693 = vmatprep.subr.mxu0 0.0
    %694 = vmatpush2.msra.mxu0 0.0
    %695 = vmatprep.subr.mxu0 0.0
    %696 = vmatpush2.msra.mxu0 0.0
    %697 = vmatprep.subr.mxu0 0.0
    %698 = vmatpush2.msra.mxu0 0.0
    %699 = vmatprep.subr.mxu0 0.0
    %700 = vmatpush2.msra.mxu0 0.0
    %701 = vmatprep.subr.mxu0 0.0
    %702 = vmatpush2.msra.mxu0 0.0
    %703 = vmatprep.subr.mxu0 0.0
    %704 = vmatpush2.msra.mxu0 0.0
    %705 = vmatprep.subr.mxu0 0.0
    %706 = vmatpush2.msra.mxu0 0.0
    %707 = vmatprep.subr.mxu0 0.0
    %708 = vmatpush2.msra.mxu0 0.0
    %709 = vmatprep.subr.mxu0 0.0
    %710 = vmatpush2.msra.mxu0 0.0
    %711 = vmatprep.subr.mxu0 0.0
    %712 = vmatpush2.msra.mxu0 0.0
    %713 = vmatprep.subr.mxu0 0.0
    %714 = vmatpush2.msra.mxu0 0.0
    %715 = vmatprep.subr.mxu0 0.0
    %716 = vmatpush2.msra.mxu0 0.0
    %717 = vmatprep.subr.mxu0 0.0
    %718 = vmatpush2.msra.mxu0 0.0
    %719 = vmatprep.subr.mxu0 0.0
    %720 = vmatpush2.msra.mxu0 0.0
    %721 = vmatprep.mubr.f32.mxu0 0.0
    %722 = vmatmul.mubr.f32.gmra.mxu0 %v655
    %v723 = vpop.f32.mrf.mxu0
    %v724 = vadd.f32 %v651, %v723
    %v725 = vpop.f32.mrf.mxu0
    %726 = vdwg.mxu0
    %v728 = vsel %vm128, %v370, 0
    %730 = vmatprep.subr.mxu0 0.0
    %731 = vmatpush1.msra.mxu0 0.0
    %732 = vmatprep.subr.mxu0 0.0
    %733 = vmatpush1.msra.mxu0 0.0
    %734 = vmatprep.subr.mxu0 0.0
    %735 = vmatpush1.msra.mxu0 0.0
    %736 = vmatprep.subr.mxu0 0.0
    %737 = vmatpush1.msra.mxu0 0.0
    %738 = vmatprep.subr.mxu0 0.0
    %739 = vmatpush1.msra.mxu0 0.0
    %740 = vmatprep.subr.mxu0 0.0
    %741 = vmatpush1.msra.mxu0 0.0
    %742 = vmatprep.subr.mxu0 0.0
    %743 = vmatpush1.msra.mxu0 0.0
    %744 = vmatprep.subr.mxu0 0.0
    %745 = vmatpush1.msra.mxu0 0.0
    %746 = vmatprep.subr.mxu0 0.0
    %747 = vmatpush1.msra.mxu0 0.0
    %748 = vmatprep.subr.mxu0 0.0
    %749 = vmatpush1.msra.mxu0 0.0
    %750 = vmatprep.subr.mxu0 0.0
    %751 = vmatpush1.msra.mxu0 0.0
    %752 = vmatprep.subr.mxu0 0.0
    %753 = vmatpush1.msra.mxu0 0.0
    %754 = vmatprep.subr.mxu0 0.0
    %755 = vmatpush1.msra.mxu0 %v576
    %756 = vmatprep.subr.mxu0 0.0
    %757 = vmatpush1.msra.mxu0 %v575
    %758 = vmatprep.subr.mxu0 0.0
    %759 = vmatpush1.msra.mxu0 %v574
    %760 = vmatprep.subr.mxu0 0.0
    %761 = vmatpush1.msra.mxu0 %v573
    %762 = vmatprep.subr.mxu0 0.0
    %763 = vmatpush2.msra.mxu0 0.0
    %764 = vmatprep.subr.mxu0 0.0
    %765 = vmatpush2.msra.mxu0 0.0
    %766 = vmatprep.subr.mxu0 0.0
    %767 = vmatpush2.msra.mxu0 0.0
    %768 = vmatprep.subr.mxu0 0.0
    %769 = vmatpush2.msra.mxu0 0.0
    %770 = vmatprep.subr.mxu0 0.0
    %771 = vmatpush2.msra.mxu0 0.0
    %772 = vmatprep.subr.mxu0 0.0
    %773 = vmatpush2.msra.mxu0 0.0
    %774 = vmatprep.subr.mxu0 0.0
    %775 = vmatpush2.msra.mxu0 0.0
    %776 = vmatprep.subr.mxu0 0.0
    %777 = vmatpush2.msra.mxu0 0.0
    %778 = vmatprep.subr.mxu0 0.0
    %779 = vmatpush2.msra.mxu0 0.0
    %780 = vmatprep.subr.mxu0 0.0
    %781 = vmatpush2.msra.mxu0 0.0
    %782 = vmatprep.subr.mxu0 0.0
    %783 = vmatpush2.msra.mxu0 0.0
    %784 = vmatprep.subr.mxu0 0.0
    %785 = vmatpush2.msra.mxu0 0.0
    %786 = vmatprep.subr.mxu0 0.0
    %787 = vmatpush2.msra.mxu0 0.0
    %788 = vmatprep.subr.mxu0 0.0
    %789 = vmatpush2.msra.mxu0 0.0
    %790 = vmatprep.subr.mxu0 0.0
    %791 = vmatpush2.msra.mxu0 0.0
    %792 = vmatprep.subr.mxu0 0.0
    %793 = vmatpush2.msra.mxu0 0.0
    %794 = vmatprep.mubr.f32.mxu0 0.0
    %795 = vmatmul.mubr.f32.gmra.mxu0 %v728
    %v796 = vpop.f32.mrf.mxu0
    %v797 = vadd.f32 0.0, %v796
    %v798 = vpop.f32.mrf.mxu0
    %799 = vdwg.mxu0
    %v800 = vadd.f32 %v724, %v797
    %801 = vmatprep.subr.mxu0 0.0
    %802 = vmatpush1.msra.mxu0 0.0
    %803 = vmatprep.subr.mxu0 0.0
    %804 = vmatpush1.msra.mxu0 0.0
    %805 = vmatprep.subr.mxu0 0.0
    %806 = vmatpush1.msra.mxu0 0.0
    %807 = vmatprep.subr.mxu0 0.0
    %808 = vmatpush1.msra.mxu0 0.0
    %809 = vmatprep.subr.mxu0 0.0
    %810 = vmatpush1.msra.mxu0 0.0
    %811 = vmatprep.subr.mxu0 0.0
    %812 = vmatpush1.msra.mxu0 0.0
    %813 = vmatprep.subr.mxu0 0.0
    %814 = vmatpush1.msra.mxu0 0.0
    %815 = vmatprep.subr.mxu0 0.0
    %816 = vmatpush1.msra.mxu0 0.0
    %817 = vmatprep.subr.mxu0 0.0
    %818 = vmatpush1.msra.mxu0 0.0
    %819 = vmatprep.subr.mxu0 0.0
    %820 = vmatpush1.msra.mxu0 0.0
    %821 = vmatprep.subr.mxu0 0.0
    %822 = vmatpush1.msra.mxu0 0.0
    %823 = vmatprep.subr.mxu0 0.0
    %824 = vmatpush1.msra.mxu0 0.0
    %825 = vmatprep.subr.mxu0 0.0
    %826 = vmatpush1.msra.mxu0 %v580
    %827 = vmatprep.subr.mxu0 0.0
    %828 = vmatpush1.msra.mxu0 %v579
    %829 = vmatprep.subr.mxu0 0.0
    %830 = vmatpush1.msra.mxu0 %v578
    %831 = vmatprep.subr.mxu0 0.0
    %832 = vmatpush1.msra.mxu0 %v577
    %833 = vmatprep.subr.mxu0 0.0
    %834 = vmatpush2.msra.mxu0 0.0
    %835 = vmatprep.subr.mxu0 0.0
    %836 = vmatpush2.msra.mxu0 0.0
    %837 = vmatprep.subr.mxu0 0.0
    %838 = vmatpush2.msra.mxu0 0.0
    %839 = vmatprep.subr.mxu0 0.0
    %840 = vmatpush2.msra.mxu0 0.0
    %841 = vmatprep.subr.mxu0 0.0
    %842 = vmatpush2.msra.mxu0 0.0
    %843 = vmatprep.subr.mxu0 0.0
    %844 = vmatpush2.msra.mxu0 0.0
    %845 = vmatprep.subr.mxu0 0.0
    %846 = vmatpush2.msra.mxu0 0.0
    %847 = vmatprep.subr.mxu0 0.0
    %848 = vmatpush2.msra.mxu0 0.0
    %849 = vmatprep.subr.mxu0 0.0
    %850 = vmatpush2.msra.mxu0 0.0
    %851 = vmatprep.subr.mxu0 0.0
    %852 = vmatpush2.msra.mxu0 0.0
    %853 = vmatprep.subr.mxu0 0.0
    %854 = vmatpush2.msra.mxu0 0.0
    %855 = vmatprep.subr.mxu0 0.0
    %856 = vmatpush2.msra.mxu0 0.0
    %857 = vmatprep.subr.mxu0 0.0
    %858 = vmatpush2.msra.mxu0 0.0
    %859 = vmatprep.subr.mxu0 0.0
    %860 = vmatpush2.msra.mxu0 0.0
    %861 = vmatprep.subr.mxu0 0.0
    %862 = vmatpush2.msra.mxu0 0.0
    %863 = vmatprep.subr.mxu0 0.0
    %864 = vmatpush2.msra.mxu0 0.0
    %865 = vmatprep.mubr.f32.mxu0 0.0
    %866 = vmatmul.mubr.f32.gmra.mxu0 %v582
    %v867 = vpop.f32.mrf.mxu0
    %v868 = vadd.f32 0.0, %v867
    %v869 = vpop.f32.mrf.mxu0
    %870 = vdwg.mxu0
    %v871 = vadd.f32 %v800, %v868
    %v872 = vld [vmem:[%s14] sm:$0x1]
    %v874 = vlaneseq
    %v875 = vshrl.u32 %v874, 7
    %v876 = vsub.s32 0, %v875
    %v877 = vrot.slane %v872, %v876
    %v879 = vadd.f32 %v871, %v877
    %v880 = vmax.f32 %v879, 0.0
    %v881 = vld [vmem:[%s15] sm:$0xff]
    %v882 = vld [vmem:[%s15 + $0x8] sm:$0xff]
    %v883 = vld [vmem:[%s15 + $0x10] sm:$0xff]
    %v884 = vld [vmem:[%s15 + $0x18] sm:$0xff]
    %v885 = vld [vmem:[%s15 + $0x20] sm:$0xff]
    %v886 = vld [vmem:[%s15 + $0x28] sm:$0xff]
    %v887 = vld [vmem:[%s15 + $0x30] sm:$0xff]
    %v888 = vld [vmem:[%s15 + $0x38] sm:$0xff]
    %v889 = vld [vmem:[%s16] sm:$0x1]
    %v891 = vlaneseq
    %v892 = vshrl.u32 %v891, 7
    %v893 = vsub.s32 0, %v892
    %v894 = vrot.slane %v889, %v893
    %v897 = vsel %vm227, %v880, 0
    %899 = vmatprep.subr.mxu0 0.0
    %900 = vmatpush1.msra.mxu0 0.0
    %901 = vmatprep.subr.mxu0 0.0
    %902 = vmatpush1.msra.mxu0 0.0
    %903 = vmatprep.subr.mxu0 0.0
    %904 = vmatpush1.msra.mxu0 0.0
    %905 = vmatprep.subr.mxu0 0.0
    %906 = vmatpush1.msra.mxu0 0.0
    %907 = vmatprep.subr.mxu0 0.0
    %908 = vmatpush1.msra.mxu0 0.0
    %909 = vmatprep.subr.mxu0 0.0
    %910 = vmatpush1.msra.mxu0 0.0
    %911 = vmatprep.subr.mxu0 0.0
    %912 = vmatpush1.msra.mxu0 0.0
    %913 = vmatprep.subr.mxu0 0.0
    %914 = vmatpush1.msra.mxu0 0.0
    %915 = vmatprep.subr.mxu0 0.0
    %916 = vmatpush1.msra.mxu0 %v888
    %917 = vmatprep.subr.mxu0 0.0
    %918 = vmatpush1.msra.mxu0 %v887
    %919 = vmatprep.subr.mxu0 0.0
    %920 = vmatpush1.msra.mxu0 %v886
    %921 = vmatprep.subr.mxu0 0.0
    %922 = vmatpush1.msra.mxu0 %v885
    %923 = vmatprep.subr.mxu0 0.0
    %924 = vmatpush1.msra.mxu0 %v884
    %925 = vmatprep.subr.mxu0 0.0
    %926 = vmatpush1.msra.mxu0 %v883
    %927 = vmatprep.subr.mxu0 0.0
    %928 = vmatpush1.msra.mxu0 %v882
    %929 = vmatprep.subr.mxu0 0.0
    %930 = vmatpush1.msra.mxu0 %v881
    %931 = vmatprep.subr.mxu0 0.0
    %932 = vmatpush2.msra.mxu0 0.0
    %933 = vmatprep.subr.mxu0 0.0
    %934 = vmatpush2.msra.mxu0 0.0
    %935 = vmatprep.subr.mxu0 0.0
    %936 = vmatpush2.msra.mxu0 0.0
    %937 = vmatprep.subr.mxu0 0.0
    %938 = vmatpush2.msra.mxu0 0.0
    %939 = vmatprep.subr.mxu0 0.0
    %940 = vmatpush2.msra.mxu0 0.0
    %941 = vmatprep.subr.mxu0 0.0
    %942 = vmatpush2.msra.mxu0 0.0
    %943 = vmatprep.subr.mxu0 0.0
    %944 = vmatpush2.msra.mxu0 0.0
    %945 = vmatprep.subr.mxu0 0.0
    %946 = vmatpush2.msra.mxu0 0.0
    %947 = vmatprep.subr.mxu0 0.0
    %948 = vmatpush2.msra.mxu0 0.0
    %949 = vmatprep.subr.mxu0 0.0
    %950 = vmatpush2.msra.mxu0 0.0
    %951 = vmatprep.subr.mxu0 0.0
    %952 = vmatpush2.msra.mxu0 0.0
    %953 = vmatprep.subr.mxu0 0.0
    %954 = vmatpush2.msra.mxu0 0.0
    %955 = vmatprep.subr.mxu0 0.0
    %956 = vmatpush2.msra.mxu0 0.0
    %957 = vmatprep.subr.mxu0 0.0
    %958 = vmatpush2.msra.mxu0 0.0
    %959 = vmatprep.subr.mxu0 0.0
    %960 = vmatpush2.msra.mxu0 0.0
    %961 = vmatprep.subr.mxu0 0.0
    %962 = vmatpush2.msra.mxu0 0.0
    %963 = vmatprep.mubr.f32.mxu0 0.0
    %964 = vmatmul.mubr.f32.gmra.mxu0 %v897
    %v965 = vpop.f32.mrf.mxu0
    %v966 = vadd.f32 %v894, %v965
    %v967 = vpop.f32.mrf.mxu0
    %968 = vdwg.mxu0
    %v969 = vmul.f32 %v366, %v564
    %v970 = vsel %vm128, %v969, 0.0
    %971 = vadd.xlane.f32.xlu0 %v970
    %v972 = vpop.xlane.xlu0 %971
    %v973 = vstv %s100
    %v974 = vmul.f32 %v973, %v972
    %v975 = vmul.f32 %v368, %v564
    %v976 = vsel %vm128, %v975, 0.0
    %977 = vadd.xlane.f32.xlu0 %v976
    %v978 = vpop.xlane.xlu0 %977
    %v979 = vmul.f32 %v973, %v978
    %v980 = vmul.f32 %v370, %v564
    %v981 = vsel %vm128, %v980, 0.0
    %982 = vadd.xlane.f32.xlu0 %v981
    %v983 = vpop.xlane.xlu0 %982
    %v984 = vmul.f32 %v973, %v983
    %v985 = vld [vmem:[%s18] sm:$0xff]
    %v986 = vsub.f32 %v985, 1.0
    %v987 = vstv %s101
    %v988 = vmul.f32 %v987, %v984
    %v989 = vsub.f32 %v979, %v988
    %v990 = vsub.f32 %v989, %v986
    %vm991 = vcmask 7168
    %v992 = vsel %vm991, %v990, -inf
    %v993 = vrot.slane %v992, 4
    %v994 = vmax.f32 %v992, %v993
    %v995 = vrot.slane %v994, 2
    %v996 = vmax.f32 %v994, %v995
    %v997 = vrot.slane %v996, 1
    %v998 = vmax.f32 %v996, %v997
    %v999 = vmax.f32 %v998, 0.0
    %v1000 = vsub.f32 %v990, %v999
    %v1001 = vmul.f32 %v1000, 1.442695
    %v1002 = vpow.pop %v1001
    %v1003 = vsel %vm991, %v1002, 0.0
    %v1004 = vrot.slane %v1003, 4
    %v1005 = vadd.f32 %v1003, %v1004
    %v1006 = vrot.slane %v1005, 2
    %v1007 = vadd.f32 %v1005, %v1006
    %v1008 = vrot.slane %v1007, 1
    %v1009 = vadd.f32 %v1007, %v1008
    %v1010 = vrcp.pop 8.0
    %v1011 = vmul.f32 %v1009, %v1010
    %v1012 = vrot.slane %v974, 4
    %v1013 = vadd.f32 %v974, %v1012
    %v1014 = vrot.slane %v1013, 2
    %v1015 = vadd.f32 %v1013, %v1014
    %v1016 = vrot.slane %v1015, 1
    %v1017 = vadd.f32 %v1015, %v1016
    %v1018 = vmul.f32 %v1017, %v1010
    %s1019 = ssub.f32 1.0, %s101
    %v1020 = vsub.f32 0.0, %v1018
    %v1021 = vstv %s1019
    %v1022 = vmul.f32 %v1021, %v1020
    %v1023 = vsub.f32 0.0, %v999
    %v1024 = vmul.f32 %v1023, 1.442695
    %v1025 = vpow.pop %v1024
    %v1026 = vmul.f32 %v1025, 1e-08
    %v1027 = vadd.f32 %v1026, %v1011
    %v1028 = vlog2.pop %v1027
    %v1029 = vmul.f32 %v1028, 0.6931472
    %v1030 = vadd.f32 %v999, %v1029
    %v1031 = vadd.f32 %v1022, %v1030
    %v1032 = vld [vmem:[%s17] sm:$0xff]
    %v1033 = vsub.f32 %v966, %v1032
    %v1034 = vmul.f32 %v1033, %v1033
    %vm1035 = vcmask 121856
    %v1036 = vsel %vm1035, %v1034, 0.0
    %1037 = vadd.xlane.f32.xlu0 %v1036
    %v1038 = vpop.xlane.xlu0 %1037
    %v1039 = vrot.slane %v1038, 4
    %v1040 = vadd.f32 %v1038, %v1039
    %v1041 = vrot.slane %v1040, 2
    %v1042 = vadd.f32 %v1040, %v1041
    %v1043 = vrot.slane %v1042, 1
    %v1044 = vadd.f32 %v1042, %v1043
    %s1045 = vtos %v1044
    %v1046 = vstv %s1045
    %v1047 = vrcp.pop 120.0
    %v1048 = vmul.f32 %v1046, %v1047
    %v1049 = vstv %s103
    %v1050 = vmul.f32 %v1049, %v1031
    %s1051 = smul.f32 %s104, %s102
    %v1052 = vstv %s1051
    %v1053 = vmul.f32 %v1052, %v1048
    %v1054 = vadd.f32 %v1050, %v1053
    %vm1055 = vcmask 0
    %1056 = vst.msk [vmem:[#allocation5] sm:$0x1] %vm1055, %v1054
    // Predicated region
    $region82: #{tpu_custom_call.1} parent=1 // pred_check
      _
    $region83: #{tpu_custom_call.1} parent=1 // pred_check_branch
      %1058 = sbr.rel (0) target = $region85
    $region84: #{tpu_custom_call.1} parent=1 // pred_region
      %s1060 = ssub.s32 16, 16
      %1061 = vsyncadd [#allocation3], %s1060
      %s1063 = sshll.u32 [#allocation5], 4
      %s1064 = int_to_ptr.vmem [resolvable:$true] %s1063
      %1066 = dma.vmem_to_hbm [thread:$0]  %s1064, 16, %s19, [#allocation3]
    $region85: #{tpu_custom_call.1} parent=1 // pred_fallthru
      _
    // Predicated region
    $region86: #{tpu_custom_call.1} parent=1 // pred_check
      _
    $region87: #{tpu_custom_call.1} parent=1 // pred_check_branch
      %1068 = sbr.rel (0) target = $region89
    $region88: #{tpu_custom_call.1} parent=1 // pred_region
      %1069 = dma.done [#allocation3], 16
    $region89: #{tpu_custom_call.1} parent=1 // pred_fallthru
      _
    %1070 = vsyncpa [#allocation3], 1
    %1071 = vsyncpa [#allocation4], 1

</llo_original>
